<compile_context>
chip_gen: v7x
topology: tpu7x:2x2x1
jax: 0.10.0
libtpu: 0.0.40
codegen_flags: <defaults>
</compile_context>

<pallas_src>
from functools import partial

import jax
import jax.numpy as jnp
from jax import lax
from jax.experimental import pallas as pl
from jax.experimental.pallas import tpu as pltpu


def attention_kernel(x_ref, gamma_ref, beta_ref, wqkv_ref, wo_ref, o_ref,
                     *, heads, dim_head, eps):
    seq, d_model = o_ref.shape
    inner = heads * dim_head
    dtype = x_ref.dtype                       # model compute dtype for MXU operands

    # ---- LayerNorm over this batch element's (N, D) rows (f32 VPU math) ----------
    x = x_ref[...].astype(jnp.float32)
    gamma = gamma_ref[...].astype(jnp.float32)
    beta = beta_ref[...].astype(jnp.float32)
    mean = jnp.mean(x, axis=-1, keepdims=True)
    var = jnp.mean((x - mean) ** 2, axis=-1, keepdims=True)
    xn = ((x - mean) * lax.rsqrt(var + eps) * gamma + beta).astype(dtype)

    # ---- Single lane-dense QKV projection: (N, D) @ (D, 3*inner) -----------------
    # Softmax scale is pre-folded into the Q columns of wqkv in the wrapper.
    qkv = jnp.dot(xn, wqkv_ref[...], preferred_element_type=jnp.float32)  # (N, 3*inner)

    # ---- Per-head attention; accumulate the output projection --------------------
    # concat_h(attn_h @ v_h) @ W_out^T  ==  sum_h (attn_h @ v_h) @ W_out^T[h*dh:(h+1)*dh]
    # so no lane-level concatenation of dh-wide pieces is ever built.
    qk_dnums = (((1,), (1,)), ((), ()))       # contract last dims: q @ k^T without a transpose
    y = jnp.zeros((seq, d_model), jnp.float32)
    for h in range(heads):
        lo = h * dim_head
        q = qkv[:, lo:lo + dim_head].astype(dtype)
        k = qkv[:, inner + lo:inner + lo + dim_head].astype(dtype)
        v = qkv[:, 2 * inner + lo:2 * inner + lo + dim_head].astype(dtype)

        dots = lax.dot_general(q, k, qk_dnums,
                               preferred_element_type=jnp.float32)        # (N, N)
        dots = dots - jnp.max(dots, axis=-1, keepdims=True)
        p = jnp.exp(dots)
        denom = jnp.sum(p, axis=-1, keepdims=True)
        attn = (p * pl.reciprocal(denom, approx=True)).astype(dtype)      # EUP slot

        o_h = jnp.dot(attn, v, preferred_element_type=jnp.float32)        # (N, dh)
        y = y + jnp.dot(o_h.astype(dtype),
                        wo_ref[lo:lo + dim_head, :],
                        preferred_element_type=jnp.float32)               # (N, D)

    o_ref[...] = y.astype(o_ref.dtype)
    # TODO(synk): for production N (>=512), tile K/V along the sequence with an
    # online-softmax (flash) inner loop instead of materializing the full (N, N)
    # score matrix per head, and tile rows of the batch element if N*D is large.


def attention_forward(x, gamma, beta, w_qkv, w_out, *, heads, dim_head):
    """x: [B, N, D]; w_qkv: [3*H*dh, D]; w_out: [D, H*dh] (PyTorch nn.Linear layout)."""
    B, N, D = x.shape
    inner = heads * dim_head
    assert w_qkv.shape == (3 * inner, D)
    assert w_out.shape == (D, inner)
    scale = float(dim_head) ** -0.5

    w_qkv = jnp.asarray(w_qkv)
    w_out = jnp.asarray(w_out)

    # Wrapper-side (free) weight re-layout:
    #  * fold the softmax scale into the Q rows of W_qkv (exact in f32),
    #  * transpose to (D, 3*inner) so the kernel's QKV projection output is lane-dense,
    #  * W_out^T is (inner, D): rows h*dh:(h+1)*dh are head h's output projection.
    wq, wk, wv = jnp.split(w_qkv, 3, axis=0)
    wqkv_t = jnp.concatenate([wq * scale, wk, wv], axis=0).T.astype(x.dtype)  # (D, 3*inner)
    wo_t = w_out.T.astype(x.dtype)                                            # (inner, D)

    x2 = x.reshape(B * N, D)                              # flatten batch*tokens (free)
    gamma2 = jnp.asarray(gamma).reshape(1, D)
    beta2 = jnp.asarray(beta).reshape(1, D)

    kernel = partial(attention_kernel, heads=heads, dim_head=dim_head, eps=1e-5)

    out2 = pl.pallas_call(
        kernel,
        out_shape=jax.ShapeDtypeStruct((B * N, D), x.dtype),
        grid=(B,),                                        # batch on a parallel grid axis
        in_specs=[
            pl.BlockSpec((N, D), lambda b: (b, 0)),               # x rows of batch element b
            pl.BlockSpec((1, D), lambda b: (0, 0)),               # gamma (resident)
            pl.BlockSpec((1, D), lambda b: (0, 0)),               # beta  (resident)
            pl.BlockSpec((D, 3 * inner), lambda b: (0, 0)),       # W_qkv^T, scale folded in
            pl.BlockSpec((inner, D), lambda b: (0, 0)),           # W_out^T (per-head rows)
        ],
        out_specs=pl.BlockSpec((N, D), lambda b: (b, 0)),
        compiler_params=pltpu.CompilerParams(
            dimension_semantics=("parallel",)),           # shards batch across v7x's 2 TCs
    )(x2, gamma2, beta2, wqkv_t, wo_t)

    return out2.reshape(B, N, D)


def attention_reference(x, gamma, beta, w_qkv, w_out, *, heads, dim_head):
    """Pure-JAX reference mirroring the PyTorch forward."""
    eps = 1e-5
    mean = x.mean(-1, keepdims=True)
    var = ((x - mean) ** 2).mean(-1, keepdims=True)
    xn = (x - mean) / jnp.sqrt(var + eps) * gamma + beta
    qkv = xn @ w_qkv.T
    B, N, _ = x.shape
    inner = heads * dim_head
    q, k, v = jnp.split(qkv, 3, axis=-1)

    def split_heads(t):
        return t.reshape(B, N, heads, dim_head).transpose(0, 2, 1, 3)

    q, k, v = split_heads(q), split_heads(k), split_heads(v)
    dots = (q @ k.transpose(0, 1, 3, 2)) * (float(dim_head) ** -0.5)
    attn = jax.nn.softmax(dots, axis=-1)
    out = attn @ v
    out = out.transpose(0, 2, 1, 3).reshape(B, N, inner)
    return out @ w_out.T


if __name__ == "__main__":
    # Small shapes consistent with the module: dim=32, heads=4, dim_head=8 -> inner_dim=32... 
    # (heads*dim_head = 32 here so the toy QKV output width is 96 lanes).
    B, N, D = 2, 8, 32
    heads, dim_head = 4, 8
    inner = heads * dim_head

    key = jax.random.PRNGKey(0)
    kx, kq, ko, kg, kb = jax.random.split(key, 5)

    x = jax.random.normal(kx, (B, N, D), dtype=jnp.float32)
    # Deterministic synthetic parameters (shapes follow nn.Linear / nn.LayerNorm).
    w_qkv = jax.random.normal(kq, (3 * inner, D), dtype=jnp.float32) * 0.05
    w_out = jax.random.normal(ko, (D, inner), dtype=jnp.float32) * 0.05
    gamma = 1.0 + 0.1 * jax.random.normal(kg, (D,), dtype=jnp.float32)
    beta = 0.1 * jax.random.normal(kb, (D,), dtype=jnp.float32)

    y = attention_forward(x, gamma, beta, w_qkv, w_out, heads=heads, dim_head=dim_head)
    y = jax.block_until_ready(y)

    y_ref = attention_reference(x, gamma, beta, w_qkv, w_out, heads=heads, dim_head=dim_head)
    assert y.shape == (B, N, D)
    # Slightly relaxed tolerance: the softmax denominator uses the EUP approximate
    # reciprocal (pl.reciprocal(approx=True)), ~1e-3-level relative error at most.
    assert jnp.allclose(y, y_ref, atol=2e-3, rtol=2e-3), "mismatch vs reference"

    print("KERNEL_OK")
</pallas_src>

<mosaic_0001>
module attributes {stable_mosaic.version = 11 : i64} {
  func.func @attention_kernel(%arg0: i32, %arg1: memref<8x32xf32, #tpu.memory_space<vmem>>, %arg2: memref<1x32xf32, #tpu.memory_space<vmem>>, %arg3: memref<1x32xf32, #tpu.memory_space<vmem>>, %arg4: memref<32x96xf32, #tpu.memory_space<vmem>>, %arg5: memref<32x32xf32, #tpu.memory_space<vmem>>, %arg6: memref<8x32xf32, #tpu.memory_space<vmem>>) attributes {dimension_semantics = [#tpu.dimension_semantics<parallel>], iteration_bounds = array<i64: 2>, scalar_prefetch = 0 : i64, scratch_operands = 0 : i64, tpu.core_type = #tpu.core_type<tc>, window_params = [{transform_indices = @transform_0, window_bounds = array<i64: 8, 32>}, {pipeline_mode = #tpu.pipeline_mode<synchronous>, transform_indices = @transform_1, window_bounds = array<i64: 1, 32>}, {pipeline_mode = #tpu.pipeline_mode<synchronous>, transform_indices = @transform_2, window_bounds = array<i64: 1, 32>}, {pipeline_mode = #tpu.pipeline_mode<synchronous>, transform_indices = @transform_3, window_bounds = array<i64: 32, 96>}, {pipeline_mode = #tpu.pipeline_mode<synchronous>, transform_indices = @transform_4, window_bounds = array<i64: 32, 32>}, {transform_indices = @transform_5, window_bounds = array<i64: 8, 32>}]} {
    %c0 = arith.constant 0 : index
    %c0_0 = arith.constant 0 : index
    %0 = vector.load %arg1[%c0, %c0_0] : memref<8x32xf32, #tpu.memory_space<vmem>>, vector<8x32xf32>
    %c0_1 = arith.constant 0 : index
    %c0_2 = arith.constant 0 : index
    %1 = vector.load %arg2[%c0_1, %c0_2] : memref<1x32xf32, #tpu.memory_space<vmem>>, vector<1x32xf32>
    %c0_3 = arith.constant 0 : index
    %c0_4 = arith.constant 0 : index
    %2 = vector.load %arg3[%c0_3, %c0_4] : memref<1x32xf32, #tpu.memory_space<vmem>>, vector<1x32xf32>
    %cst = arith.constant dense<0.000000e+00> : vector<8xf32>
    %3 = vector.multi_reduction <add>, %0, %cst [1] : vector<8x32xf32> to vector<8xf32>
    %4 = vector.shape_cast %3 : vector<8xf32> to vector<8x1xf32>
    %cst_5 = arith.constant 3.200000e+01 : f32
    %5 = vector.broadcast %cst_5 : f32 to vector<8x1xf32>
    %6 = arith.divf %4, %5 : vector<8x1xf32>
    %7 = vector.broadcast %6 : vector<8x1xf32> to vector<8x32xf32>
    %8 = arith.subf %0, %7 : vector<8x32xf32>
    %9 = arith.mulf %8, %8 : vector<8x32xf32>
    %cst_6 = arith.constant dense<0.000000e+00> : vector<8xf32>
    %10 = vector.multi_reduction <add>, %9, %cst_6 [1] : vector<8x32xf32> to vector<8xf32>
    %11 = vector.shape_cast %10 : vector<8xf32> to vector<8x1xf32>
    %cst_7 = arith.constant 3.200000e+01 : f32
    %12 = vector.broadcast %cst_7 : f32 to vector<8x1xf32>
    %13 = arith.divf %11, %12 : vector<8x1xf32>
    %14 = vector.broadcast %6 : vector<8x1xf32> to vector<8x32xf32>
    %15 = arith.subf %0, %14 : vector<8x32xf32>
    %cst_8 = arith.constant 9.99999974E-6 : f32
    %16 = vector.broadcast %cst_8 : f32 to vector<8x1xf32>
    %17 = arith.addf %13, %16 : vector<8x1xf32>
    %18 = math.rsqrt %17 : vector<8x1xf32>
    %19 = vector.broadcast %18 : vector<8x1xf32> to vector<8x32xf32>
    %20 = arith.mulf %15, %19 : vector<8x32xf32>
    %21 = vector.broadcast %1 : vector<1x32xf32> to vector<8x32xf32>
    %22 = arith.mulf %20, %21 : vector<8x32xf32>
    %23 = vector.broadcast %2 : vector<1x32xf32> to vector<8x32xf32>
    %24 = arith.addf %22, %23 : vector<8x32xf32>
    %c0_9 = arith.constant 0 : index
    %c0_10 = arith.constant 0 : index
    %25 = vector.load %arg4[%c0_9, %c0_10] : memref<32x96xf32, #tpu.memory_space<vmem>>, vector<32x96xf32>
    %cst_11 = arith.constant dense<0.000000e+00> : vector<8x96xf32>
    %26 = tpu.matmul %24, %25, %cst_11 {dimension_numbers = #tpu.dot_dimension_numbers<[1], [0], [0], [1], [0, 0, 1, 1], [], []>} : vector<8x32xf32>, vector<32x96xf32>, vector<8x96xf32> -> vector<8x96xf32>
    %cst_12 = arith.constant 0.000000e+00 : f32
    %27 = vector.broadcast %cst_12 : f32 to vector<8x32xf32>
    %28 = vector.extract_strided_slice %26 {offsets = [0, 0], sizes = [8, 8], strides = [1, 1]} : vector<8x96xf32> to vector<8x8xf32>
    %29 = vector.extract_strided_slice %26 {offsets = [0, 32], sizes = [8, 8], strides = [1, 1]} : vector<8x96xf32> to vector<8x8xf32>
    %30 = vector.extract_strided_slice %26 {offsets = [0, 64], sizes = [8, 8], strides = [1, 1]} : vector<8x96xf32> to vector<8x8xf32>
    %cst_13 = arith.constant dense<0.000000e+00> : vector<8x8xf32>
    %31 = tpu.matmul %28, %29, %cst_13 {dimension_numbers = #tpu.dot_dimension_numbers<[1], [1], [0], [0], [0, 0, 1, 0], [], []>} : vector<8x8xf32>, vector<8x8xf32>, vector<8x8xf32> -> vector<8x8xf32>
    %cst_14 = arith.constant dense<0xFF800000> : vector<8xf32>
    %32 = vector.multi_reduction <maximumf>, %31, %cst_14 [1] : vector<8x8xf32> to vector<8xf32>
    %33 = vector.shape_cast %32 : vector<8xf32> to vector<8x1xf32>
    %34 = vector.broadcast %33 : vector<8x1xf32> to vector<8x8xf32>
    %35 = arith.subf %31, %34 : vector<8x8xf32>
    %36 = math.exp %35 : vector<8x8xf32>
    %cst_15 = arith.constant dense<0.000000e+00> : vector<8xf32>
    %37 = vector.multi_reduction <add>, %36, %cst_15 [1] : vector<8x8xf32> to vector<8xf32>
    %38 = vector.shape_cast %37 : vector<8xf32> to vector<8x1xf32>
    %39 = tpu.reciprocal %38 {approx = true} : vector<8x1xf32> -> vector<8x1xf32>
    %40 = vector.broadcast %39 : vector<8x1xf32> to vector<8x8xf32>
    %41 = arith.mulf %36, %40 : vector<8x8xf32>
    %cst_16 = arith.constant dense<0.000000e+00> : vector<8x8xf32>
    %42 = tpu.matmul %41, %30, %cst_16 {dimension_numbers = #tpu.dot_dimension_numbers<[1], [0], [0], [1], [0, 0, 1, 1], [], []>} : vector<8x8xf32>, vector<8x8xf32>, vector<8x8xf32> -> vector<8x8xf32>
    %c0_17 = arith.constant 0 : index
    %c0_18 = arith.constant 0 : index
    %43 = vector.load %arg5[%c0_17, %c0_18] : memref<32x32xf32, #tpu.memory_space<vmem>>, vector<8x32xf32>
    %cst_19 = arith.constant dense<0.000000e+00> : vector<8x32xf32>
    %44 = tpu.matmul %42, %43, %cst_19 {dimension_numbers = #tpu.dot_dimension_numbers<[1], [0], [0], [1], [0, 0, 1, 1], [], []>} : vector<8x8xf32>, vector<8x32xf32>, vector<8x32xf32> -> vector<8x32xf32>
    %45 = arith.addf %27, %44 : vector<8x32xf32>
    %46 = vector.extract_strided_slice %26 {offsets = [0, 8], sizes = [8, 8], strides = [1, 1]} : vector<8x96xf32> to vector<8x8xf32>
    %47 = vector.extract_strided_slice %26 {offsets = [0, 40], sizes = [8, 8], strides = [1, 1]} : vector<8x96xf32> to vector<8x8xf32>
    %48 = vector.extract_strided_slice %26 {offsets = [0, 72], sizes = [8, 8], strides = [1, 1]} : vector<8x96xf32> to vector<8x8xf32>
    %cst_20 = arith.constant dense<0.000000e+00> : vector<8x8xf32>
    %49 = tpu.matmul %46, %47, %cst_20 {dimension_numbers = #tpu.dot_dimension_numbers<[1], [1], [0], [0], [0, 0, 1, 0], [], []>} : vector<8x8xf32>, vector<8x8xf32>, vector<8x8xf32> -> vector<8x8xf32>
    %cst_21 = arith.constant dense<0xFF800000> : vector<8xf32>
    %50 = vector.multi_reduction <maximumf>, %49, %cst_21 [1] : vector<8x8xf32> to vector<8xf32>
    %51 = vector.shape_cast %50 : vector<8xf32> to vector<8x1xf32>
    %52 = vector.broadcast %51 : vector<8x1xf32> to vector<8x8xf32>
    %53 = arith.subf %49, %52 : vector<8x8xf32>
    %54 = math.exp %53 : vector<8x8xf32>
    %cst_22 = arith.constant dense<0.000000e+00> : vector<8xf32>
    %55 = vector.multi_reduction <add>, %54, %cst_22 [1] : vector<8x8xf32> to vector<8xf32>
    %56 = vector.shape_cast %55 : vector<8xf32> to vector<8x1xf32>
    %57 = tpu.reciprocal %56 {approx = true} : vector<8x1xf32> -> vector<8x1xf32>
    %58 = vector.broadcast %57 : vector<8x1xf32> to vector<8x8xf32>
    %59 = arith.mulf %54, %58 : vector<8x8xf32>
    %cst_23 = arith.constant dense<0.000000e+00> : vector<8x8xf32>
    %60 = tpu.matmul %59, %48, %cst_23 {dimension_numbers = #tpu.dot_dimension_numbers<[1], [0], [0], [1], [0, 0, 1, 1], [], []>} : vector<8x8xf32>, vector<8x8xf32>, vector<8x8xf32> -> vector<8x8xf32>
    %c8 = arith.constant 8 : index
    %c0_24 = arith.constant 0 : index
    %61 = vector.load %arg5[%c8, %c0_24] : memref<32x32xf32, #tpu.memory_space<vmem>>, vector<8x32xf32>
    %cst_25 = arith.constant dense<0.000000e+00> : vector<8x32xf32>
    %62 = tpu.matmul %60, %61, %cst_25 {dimension_numbers = #tpu.dot_dimension_numbers<[1], [0], [0], [1], [0, 0, 1, 1], [], []>} : vector<8x8xf32>, vector<8x32xf32>, vector<8x32xf32> -> vector<8x32xf32>
    %63 = arith.addf %45, %62 : vector<8x32xf32>
    %64 = vector.extract_strided_slice %26 {offsets = [0, 16], sizes = [8, 8], strides = [1, 1]} : vector<8x96xf32> to vector<8x8xf32>
    %65 = vector.extract_strided_slice %26 {offsets = [0, 48], sizes = [8, 8], strides = [1, 1]} : vector<8x96xf32> to vector<8x8xf32>
    %66 = vector.extract_strided_slice %26 {offsets = [0, 80], sizes = [8, 8], strides = [1, 1]} : vector<8x96xf32> to vector<8x8xf32>
    %cst_26 = arith.constant dense<0.000000e+00> : vector<8x8xf32>
    %67 = tpu.matmul %64, %65, %cst_26 {dimension_numbers = #tpu.dot_dimension_numbers<[1], [1], [0], [0], [0, 0, 1, 0], [], []>} : vector<8x8xf32>, vector<8x8xf32>, vector<8x8xf32> -> vector<8x8xf32>
    %cst_27 = arith.constant dense<0xFF800000> : vector<8xf32>
    %68 = vector.multi_reduction <maximumf>, %67, %cst_27 [1] : vector<8x8xf32> to vector<8xf32>
    %69 = vector.shape_cast %68 : vector<8xf32> to vector<8x1xf32>
    %70 = vector.broadcast %69 : vector<8x1xf32> to vector<8x8xf32>
    %71 = arith.subf %67, %70 : vector<8x8xf32>
    %72 = math.exp %71 : vector<8x8xf32>
    %cst_28 = arith.constant dense<0.000000e+00> : vector<8xf32>
    %73 = vector.multi_reduction <add>, %72, %cst_28 [1] : vector<8x8xf32> to vector<8xf32>
    %74 = vector.shape_cast %73 : vector<8xf32> to vector<8x1xf32>
    %75 = tpu.reciprocal %74 {approx = true} : vector<8x1xf32> -> vector<8x1xf32>
    %76 = vector.broadcast %75 : vector<8x1xf32> to vector<8x8xf32>
    %77 = arith.mulf %72, %76 : vector<8x8xf32>
    %cst_29 = arith.constant dense<0.000000e+00> : vector<8x8xf32>
    %78 = tpu.matmul %77, %66, %cst_29 {dimension_numbers = #tpu.dot_dimension_numbers<[1], [0], [0], [1], [0, 0, 1, 1], [], []>} : vector<8x8xf32>, vector<8x8xf32>, vector<8x8xf32> -> vector<8x8xf32>
    %c16 = arith.constant 16 : index
    %c0_30 = arith.constant 0 : index
    %79 = vector.load %arg5[%c16, %c0_30] : memref<32x32xf32, #tpu.memory_space<vmem>>, vector<8x32xf32>
    %cst_31 = arith.constant dense<0.000000e+00> : vector<8x32xf32>
    %80 = tpu.matmul %78, %79, %cst_31 {dimension_numbers = #tpu.dot_dimension_numbers<[1], [0], [0], [1], [0, 0, 1, 1], [], []>} : vector<8x8xf32>, vector<8x32xf32>, vector<8x32xf32> -> vector<8x32xf32>
    %81 = arith.addf %63, %80 : vector<8x32xf32>
    %82 = vector.extract_strided_slice %26 {offsets = [0, 24], sizes = [8, 8], strides = [1, 1]} : vector<8x96xf32> to vector<8x8xf32>
    %83 = vector.extract_strided_slice %26 {offsets = [0, 56], sizes = [8, 8], strides = [1, 1]} : vector<8x96xf32> to vector<8x8xf32>
    %84 = vector.extract_strided_slice %26 {offsets = [0, 88], sizes = [8, 8], strides = [1, 1]} : vector<8x96xf32> to vector<8x8xf32>
    %cst_32 = arith.constant dense<0.000000e+00> : vector<8x8xf32>
    %85 = tpu.matmul %82, %83, %cst_32 {dimension_numbers = #tpu.dot_dimension_numbers<[1], [1], [0], [0], [0, 0, 1, 0], [], []>} : vector<8x8xf32>, vector<8x8xf32>, vector<8x8xf32> -> vector<8x8xf32>
    %cst_33 = arith.constant dense<0xFF800000> : vector<8xf32>
    %86 = vector.multi_reduction <maximumf>, %85, %cst_33 [1] : vector<8x8xf32> to vector<8xf32>
    %87 = vector.shape_cast %86 : vector<8xf32> to vector<8x1xf32>
    %88 = vector.broadcast %87 : vector<8x1xf32> to vector<8x8xf32>
    %89 = arith.subf %85, %88 : vector<8x8xf32>
    %90 = math.exp %89 : vector<8x8xf32>
    %cst_34 = arith.constant dense<0.000000e+00> : vector<8xf32>
    %91 = vector.multi_reduction <add>, %90, %cst_34 [1] : vector<8x8xf32> to vector<8xf32>
    %92 = vector.shape_cast %91 : vector<8xf32> to vector<8x1xf32>
    %93 = tpu.reciprocal %92 {approx = true} : vector<8x1xf32> -> vector<8x1xf32>
    %94 = vector.broadcast %93 : vector<8x1xf32> to vector<8x8xf32>
    %95 = arith.mulf %90, %94 : vector<8x8xf32>
    %cst_35 = arith.constant dense<0.000000e+00> : vector<8x8xf32>
    %96 = tpu.matmul %95, %84, %cst_35 {dimension_numbers = #tpu.dot_dimension_numbers<[1], [0], [0], [1], [0, 0, 1, 1], [], []>} : vector<8x8xf32>, vector<8x8xf32>, vector<8x8xf32> -> vector<8x8xf32>
    %c24 = arith.constant 24 : index
    %c0_36 = arith.constant 0 : index
    %97 = vector.load %arg5[%c24, %c0_36] : memref<32x32xf32, #tpu.memory_space<vmem>>, vector<8x32xf32>
    %cst_37 = arith.constant dense<0.000000e+00> : vector<8x32xf32>
    %98 = tpu.matmul %96, %97, %cst_37 {dimension_numbers = #tpu.dot_dimension_numbers<[1], [0], [0], [1], [0, 0, 1, 1], [], []>} : vector<8x8xf32>, vector<8x32xf32>, vector<8x32xf32> -> vector<8x32xf32>
    %99 = arith.addf %81, %98 : vector<8x32xf32>
    %c0_38 = arith.constant 0 : index
    %c0_39 = arith.constant 0 : index
    %100 = vector.load %arg6[%c0_38, %c0_39] : memref<8x32xf32, #tpu.memory_space<vmem>>, vector<8x32xf32>
    tpu.vector_store %arg6[%c0_38, %c0_39], %99 {strides = array<i32>} : memref<8x32xf32, #tpu.memory_space<vmem>>, vector<8x32xf32>,
    return
  }
  func.func @transform_0(%arg0: i32) -> (i32, i32) {
    %c0_i32 = arith.constant 0 : i32
    %c0_i32_0 = arith.constant 0 : i32
    return %arg0, %c0_i32 : i32, i32
  }
  func.func @transform_1(%arg0: i32) -> (i32, i32) {
    %c0_i32 = arith.constant 0 : i32
    %c0_i32_0 = arith.constant 0 : i32
    %c0_i32_1 = arith.constant 0 : i32
    return %c0_i32, %c0_i32_0 : i32, i32
  }
  func.func @transform_2(%arg0: i32) -> (i32, i32) {
    %c0_i32 = arith.constant 0 : i32
    %c0_i32_0 = arith.constant 0 : i32
    %c0_i32_1 = arith.constant 0 : i32
    return %c0_i32, %c0_i32_0 : i32, i32
  }
  func.func @transform_3(%arg0: i32) -> (i32, i32) {
    %c0_i32 = arith.constant 0 : i32
    %c0_i32_0 = arith.constant 0 : i32
    %c0_i32_1 = arith.constant 0 : i32
    return %c0_i32, %c0_i32_0 : i32, i32
  }
  func.func @transform_4(%arg0: i32) -> (i32, i32) {
    %c0_i32 = arith.constant 0 : i32
    %c0_i32_0 = arith.constant 0 : i32
    %c0_i32_1 = arith.constant 0 : i32
    return %c0_i32, %c0_i32_0 : i32, i32
  }
  func.func @transform_5(%arg0: i32) -> (i32, i32) {
    %c0_i32 = arith.constant 0 : i32
    %c0_i32_0 = arith.constant 0 : i32
    return %arg0, %c0_i32 : i32, i32
  }
}

</mosaic_0001>

<llo_original>
// kernel: tpu_custom_call.1
$region0: #{tpu_custom_call.1}
  #allocation0 [shape = 'u32[]', space=smem, size = 0x4, offset = 0x4, fixed_abs, tag = 'smem constant byte address 0x4 - core index']
  #allocation1 [shape = 'u32[144,128]{1,0:T(1,128)}', space=vmem, size = 0x12000, scoped, tag = 'internal scratch']
  %s0 = inlined_call_operand.hbm [shape: f32[16,32], index: 0, kind: input, shape index: {}]
  %s1 = inlined_call_operand.vmem [shape: f32[1,32], index: 1, kind: input, shape index: {}]
  %s2 = inlined_call_operand.vmem [shape: f32[1,32], index: 2, kind: input, shape index: {}]
  %s3 = inlined_call_operand.hbm [shape: f32[32,96], index: 3, kind: input, shape index: {}]
  %s4 = inlined_call_operand.hbm [shape: f32[32,32], index: 4, kind: input, shape index: {}]
  %s5 = inlined_call_operand.hbm [shape: f32[16,32], index: 5, kind: output, shape index: {}]
  %s6 = sld [smem:[#allocation0]]
  $region65: #{tpu_custom_call.1} parent=0
    _
  %s8 = ssub.s32 1, %s6
  %s9 = scalar_select 0, %s8, %s6
  $region1: #{tpu_custom_call.1} parent=0
    #allocation2 [shape = 'u8[8192]{0}', space=vmem, size = 0x2000, scoped, tag = 'input window, operand 0']
    #allocation3 [shape = 's32[2]{0}', space=sflag, size = 0x8, scoped, tag = 'scoped memory for tpu_custom_call.1']
    #allocation4 [shape = 's32[2]{0}', space=sflag, size = 0x8, scoped, tag = 'scoped memory for tpu_custom_call.1']
    #allocation5 [shape = 'u8[16384]{0}', space=vmem, size = 0x4000, scoped, tag = 'input window, operand 3, single buffered']
    #allocation6 [shape = 's32[1]{0}', space=sflag, size = 0x4, scoped, tag = 'scoped memory for tpu_custom_call.1']
    #allocation7 [shape = 'u8[16384]{0}', space=vmem, size = 0x4000, scoped, tag = 'input window, operand 4, single buffered']
    #allocation8 [shape = 'u8[8192]{0}', space=vmem, size = 0x2000, scoped, tag = 'output window, operand 0']
    %10 = vsyncpa [#allocation3], 0
    %s11 = scalar_lea.sflag [#allocation3], 1
    %12 = vsyncpa %s11, 0
    %13 = vsyncpa [#allocation6], 0
    %14 = vsyncpa [#allocation4], 0
    %s15 = scalar_lea.sflag [#allocation4], 1
    %16 = vsyncpa %s15, 0
    loop: start=0, step=1, limit=4
    $region2: #{tpu_custom_call.1} parent=1 // loop_pre_header
      _
    $region3: #{tpu_custom_call.1} parent=1 // loop_header
      %s18 = sphi 0, %s22
      %p19 = scmp.ge.s32.totalorder %s18, 4
      %s28 = sphi 0, %s30
      %s31 = sphi 0, %s28
      %s32 = sphi 0, %s31
      %s48 = sphi 0, %s32
      %s52 = sphi 0, %s52
      %s54 = sphi 0, %s52
      %s55 = sphi 0, %s54
      %s69 = sphi 0, %s55
      %s73 = sphi 0, %s73
      %s75 = sphi 0, %s73
      %s76 = sphi 0, %s75
      %s90 = sphi 0, %s76
      %s94 = sphi 0, %s94
      %s96 = sphi 0, %s94
      %s97 = sphi 0, %s96
      %s111 = sphi 0, %s97
      %s115 = sphi 0, %s115
      %s117 = sphi 0, %s115
      %s118 = sphi 0, %s117
      %s132 = sphi 0, %s118
      %s138 = sphi 0, %s140
      %s141 = sphi 0, %s138
      %s142 = sphi 0, %s141
      %s158 = sphi 0, %s142
    $region4: #{tpu_custom_call.1} parent=1 // loop_header_branch
      %21 = sbr.rel (%p19) target = $region8
    $region5: #{tpu_custom_call.1} parent=1 // loop_body
      %s23 = ssub.s32 %s18, 1
      %s24 = ssub.s32 %s18, 2
      %s25 = sadd.s32 %s18, 1
      %s26 = ssub.s32 %s18, %s25
      %p27 = scmp.eq.s32.totalorder %s26, 0
      %s29 = sadd.s32 %s28, 1
      %s30 = scalar_select %p27, %s28, %s29
      %p33 = pneg %p27
      %p34 = scmp.eq.s32.totalorder %s18, 1
      %p35 = por %p33, %p34
      %p36 = scmp.ne.s32.totalorder %s28, %s31
      %p37 = scmp.eq.s32.totalorder %s18, 0
      %p38 = por %p36, %p37
      %p39 = scmp.ne.s32.totalorder %s28, %s31
      %p40 = scmp.eq.s32.totalorder %s23, 1
      %p41 = por %p39, %p40
      %p42 = scmp.ne.s32.totalorder %s31, %s32
      %p43 = scmp.eq.s32.totalorder %s23, 0
      %p44 = por %p42, %p43
      %p45 = scmp.ne.s32.totalorder %s31, %s32
      %p46 = scmp.eq.s32.totalorder %s24, 1
      %p47 = por %p45, %p46
      %p49 = scmp.ne.s32.totalorder %s32, %s48
      %p50 = scmp.eq.s32.totalorder %s24, 0
      %p51 = por %p49, %p50
      %s53 = sadd.s32 %s52, 1
      %p56 = scmp.eq.s32.totalorder %s18, 1
      %p57 = scmp.ne.s32.totalorder %s52, %s54
      %p58 = scmp.eq.s32.totalorder %s18, 0
      %p59 = por %p57, %p58
      %p60 = scmp.ne.s32.totalorder %s52, %s54
      %p61 = scmp.eq.s32.totalorder %s23, 1
      %p62 = por %p60, %p61
      %p63 = scmp.ne.s32.totalorder %s54, %s55
      %p64 = scmp.eq.s32.totalorder %s23, 0
      %p65 = por %p63, %p64
      %p66 = scmp.ne.s32.totalorder %s54, %s55
      %p67 = scmp.eq.s32.totalorder %s24, 1
      %p68 = por %p66, %p67
      %p70 = scmp.ne.s32.totalorder %s55, %s69
      %p71 = scmp.eq.s32.totalorder %s24, 0
      %p72 = por %p70, %p71
      %s74 = sadd.s32 %s73, 1
      %p77 = scmp.eq.s32.totalorder %s18, 1
      %p78 = scmp.ne.s32.totalorder %s73, %s75
      %p79 = scmp.eq.s32.totalorder %s18, 0
      %p80 = por %p78, %p79
      %p81 = scmp.ne.s32.totalorder %s73, %s75
      %p82 = scmp.eq.s32.totalorder %s23, 1
      %p83 = por %p81, %p82
      %p84 = scmp.ne.s32.totalorder %s75, %s76
      %p85 = scmp.eq.s32.totalorder %s23, 0
      %p86 = por %p84, %p85
      %p87 = scmp.ne.s32.totalorder %s75, %s76
      %p88 = scmp.eq.s32.totalorder %s24, 1
      %p89 = por %p87, %p88
      %p91 = scmp.ne.s32.totalorder %s76, %s90
      %p92 = scmp.eq.s32.totalorder %s24, 0
      %p93 = por %p91, %p92
      %s95 = sadd.s32 %s94, 1
      %p98 = scmp.eq.s32.totalorder %s18, 1
      %p99 = scmp.ne.s32.totalorder %s94, %s96
      %p100 = scmp.eq.s32.totalorder %s18, 0
      %p101 = por %p99, %p100
      %p102 = scmp.ne.s32.totalorder %s94, %s96
      %p103 = scmp.eq.s32.totalorder %s23, 1
      %p104 = por %p102, %p103
      %p105 = scmp.ne.s32.totalorder %s96, %s97
      %p106 = scmp.eq.s32.totalorder %s23, 0
      %p107 = por %p105, %p106
      %p108 = scmp.ne.s32.totalorder %s96, %s97
      %p109 = scmp.eq.s32.totalorder %s24, 1
      %p110 = por %p108, %p109
      %p112 = scmp.ne.s32.totalorder %s97, %s111
      %p113 = scmp.eq.s32.totalorder %s24, 0
      %p114 = por %p112, %p113
      %s116 = sadd.s32 %s115, 1
      %p119 = scmp.eq.s32.totalorder %s18, 1
      %p120 = scmp.ne.s32.totalorder %s115, %s117
      %p121 = scmp.eq.s32.totalorder %s18, 0
      %p122 = por %p120, %p121
      %p123 = scmp.ne.s32.totalorder %s115, %s117
      %p124 = scmp.eq.s32.totalorder %s23, 1
      %p125 = por %p123, %p124
      %p126 = scmp.ne.s32.totalorder %s117, %s118
      %p127 = scmp.eq.s32.totalorder %s23, 0
      %p128 = por %p126, %p127
      %p129 = scmp.ne.s32.totalorder %s117, %s118
      %p130 = scmp.eq.s32.totalorder %s24, 1
      %p131 = por %p129, %p130
      %p133 = scmp.ne.s32.totalorder %s118, %s132
      %p134 = scmp.eq.s32.totalorder %s24, 0
      %p135 = por %p133, %p134
      %s136 = ssub.s32 %s18, %s25
      %p137 = scmp.eq.s32.totalorder %s136, 0
      %s139 = sadd.s32 %s138, 1
      %s140 = scalar_select %p137, %s138, %s139
      %p143 = pneg %p137
      %p144 = scmp.eq.s32.totalorder %s18, 1
      %p145 = por %p143, %p144
      %p146 = scmp.ne.s32.totalorder %s138, %s141
      %p147 = scmp.eq.s32.totalorder %s18, 0
      %p148 = por %p146, %p147
      %p149 = scmp.ne.s32.totalorder %s138, %s141
      %p150 = scmp.eq.s32.totalorder %s23, 1
      %p151 = por %p149, %p150
      %p152 = scmp.ne.s32.totalorder %s141, %s142
      %p153 = scmp.eq.s32.totalorder %s23, 0
      %p154 = por %p152, %p153
      %p155 = scmp.ne.s32.totalorder %s141, %s142
      %p156 = scmp.eq.s32.totalorder %s24, 1
      %p157 = por %p155, %p156
      %p159 = scmp.ne.s32.totalorder %s142, %s158
      %p160 = scmp.eq.s32.totalorder %s24, 0
      %p161 = por %p159, %p160
      %p162 = scmp.le.s32.totalorder 1, %s18
      %p163 = scmp.lt.s32.totalorder %s18, 3
      %p164 = pnand %p162, %p163
      %p165 = pneg %p164
      // Predicated region
      $region9: #{tpu_custom_call.1} parent=5 // pred_check
        _
      $region10: #{tpu_custom_call.1} parent=5 // pred_check_branch
        %167 = sbr.rel (%p164) target = $region12
      $region11: #{tpu_custom_call.1} parent=5 // pred_region
        %s168 = ssub.s32 %s18, 1
        // Predicated region
        $region13: #{tpu_custom_call.1} parent=11 // pred_check
          %p169 = pneg %p65
        $region14: #{tpu_custom_call.1} parent=11 // pred_check_branch
          %171 = sbr.rel (%p169) target = $region16
        $region15: #{tpu_custom_call.1} parent=11 // pred_region
          _
        $region16: #{tpu_custom_call.1} parent=11 // pred_fallthru
          _
        // Predicated region
        $region17: #{tpu_custom_call.1} parent=11 // pred_check
          %p172 = pneg %p86
        $region18: #{tpu_custom_call.1} parent=11 // pred_check_branch
          %174 = sbr.rel (%p172) target = $region20
        $region19: #{tpu_custom_call.1} parent=11 // pred_region
          _
        $region20: #{tpu_custom_call.1} parent=11 // pred_fallthru
          _
        // Predicated region
        $region21: #{tpu_custom_call.1} parent=11 // pred_check
          %p175 = pneg %p107
        $region22: #{tpu_custom_call.1} parent=11 // pred_check_branch
          %177 = sbr.rel (%p175) target = $region24
        $region23: #{tpu_custom_call.1} parent=11 // pred_region
          %s179 = ssub.s32 512, 512
          %180 = vsyncadd [#allocation6], %s179
          %s181 = sshll.u32 [#allocation5], 4
          %s182 = int_to_ptr.vmem [resolvable:$true] %s181
          %187 = dma.hbm_to_vmem [thread:$0]  %s3, 512, %s182, [#allocation6], 128, 128, 8
        $region24: #{tpu_custom_call.1} parent=11 // pred_fallthru
          _
        // Predicated region
        $region25: #{tpu_custom_call.1} parent=11 // pred_check
          %p188 = pneg %p128
        $region26: #{tpu_custom_call.1} parent=11 // pred_check_branch
          %190 = sbr.rel (%p188) target = $region28
        $region27: #{tpu_custom_call.1} parent=11 // pred_region
          %s192 = ssub.s32 512, 512
          %193 = vsyncadd [#allocation6], %s192
          %s194 = sshll.u32 [#allocation7], 4
          %s195 = int_to_ptr.vmem [resolvable:$true] %s194
          %200 = dma.hbm_to_vmem [thread:$0]  %s4, 512, %s195, [#allocation6], 128, 128, 8
        $region28: #{tpu_custom_call.1} parent=11 // pred_fallthru
          _
      $region12: #{tpu_custom_call.1} parent=5 // pred_fallthru
        _
      %p201 = scmp.lt.s32.totalorder %s18, 2
      // Predicated region
      $region29: #{tpu_custom_call.1} parent=5 // pred_check
        %p202 = pneg %p201
      $region30: #{tpu_custom_call.1} parent=5 // pred_check_branch
        %204 = sbr.rel (%p202) target = $region32
      $region31: #{tpu_custom_call.1} parent=5 // pred_region
        // Predicated region
        $region33: #{tpu_custom_call.1} parent=31 // pred_check
          %p205 = pneg %p38
        $region34: #{tpu_custom_call.1} parent=31 // pred_check_branch
          %207 = sbr.rel (%p205) target = $region36
        $region35: #{tpu_custom_call.1} parent=31 // pred_region
          %s208 = sand.u32 %s28, 1
          %s209 = scalar_lea.sflag [#allocation3], %s208
          %s210 = sand.u32 %s28, 1
          %s211 = smul.addr %s210, 8
          %s212 = scalar_lea.vmem [#allocation2], %s211
          %s214 = ssub.s32 128, 128
          %215 = vsyncadd %s209, %s214
          %s216 = smul.addr %s18, 128
          %s217 = scalar_lea.hbm %s0, %s216
          %s219 = sshll.u32 %s212, 4
          %s220 = int_to_ptr.vmem [resolvable:$true] %s219
          %222 = dma.hbm_to_vmem [thread:$0]  %s217, 128, %s220, %s209
        $region36: #{tpu_custom_call.1} parent=31 // pred_fallthru
          _
      $region32: #{tpu_custom_call.1} parent=5 // pred_fallthru
        _
      %p223 = scmp.le.s32.totalorder 1, %s18
      %p224 = scmp.lt.s32.totalorder %s18, 3
      %p225 = pnand %p223, %p224
      %p226 = pneg %p225
      // Predicated region
      $region37: #{tpu_custom_call.1} parent=5 // pred_check
        _
      $region38: #{tpu_custom_call.1} parent=5 // pred_check_branch
        %228 = sbr.rel (%p225) target = $region40
      $region39: #{tpu_custom_call.1} parent=5 // pred_region
        %s229 = ssub.s32 %s18, 1
        %s230 = sand.u32 %s31, 1
        %s231 = scalar_lea.sflag [#allocation3], %s230
        %s232 = sand.u32 %s31, 1
        %s233 = smul.addr %s232, 8
        %s234 = scalar_lea.vmem [#allocation2], %s233
        // Predicated region
        $region41: #{tpu_custom_call.1} parent=39 // pred_check
          %p235 = pneg %p44
        $region42: #{tpu_custom_call.1} parent=39 // pred_check_branch
          %237 = sbr.rel (%p235) target = $region44
        $region43: #{tpu_custom_call.1} parent=39 // pred_region
          %238 = dma.done %s231, 128
        $region44: #{tpu_custom_call.1} parent=39 // pred_fallthru
          _
        // Predicated region
        $region45: #{tpu_custom_call.1} parent=39 // pred_check
          %p239 = pneg %p107
        $region46: #{tpu_custom_call.1} parent=39 // pred_check_branch
          %241 = sbr.rel (%p239) target = $region48
        $region47: #{tpu_custom_call.1} parent=39 // pred_region
          %242 = dma.done [#allocation6], 512
        $region48: #{tpu_custom_call.1} parent=39 // pred_fallthru
          _
        // Predicated region
        $region49: #{tpu_custom_call.1} parent=39 // pred_check
          %p243 = pneg %p128
        $region50: #{tpu_custom_call.1} parent=39 // pred_check_branch
          %245 = sbr.rel (%p243) target = $region52
        $region51: #{tpu_custom_call.1} parent=39 // pred_region
          %246 = dma.done [#allocation6], 512
        $region52: #{tpu_custom_call.1} parent=39 // pred_fallthru
          _
        %s247 = sand.u32 %s31, 1
        %s248 = scalar_lea.sflag [#allocation3], %s247
        %s249 = sand.u32 %s31, 1
        %s250 = smul.addr %s249, 8
        %s251 = scalar_lea.vmem [#allocation2], %s250
        %p252 = pneg %p44
        %p253 = pneg %p41
        %p254 = pneg %p65
        %p255 = pneg %p62
        %p256 = pneg %p86
        %p257 = pneg %p83
        %p258 = pneg %p107
        %p259 = pneg %p104
        %p260 = pneg %p128
        %p261 = pneg %p125
        %p262 = pneg %p154
        %p263 = pneg %p151
        %s264 = sand.u32 %s141, 1
        %s265 = scalar_lea.sflag [#allocation4], %s264
        %s266 = sand.u32 %s141, 1
        %s267 = smul.addr %s266, 8
        %s268 = scalar_lea.vmem [#allocation8], %s267
        %v269 = vld [vmem:[%s234] sm:$0xff]
        %v270 = vld [vmem:[%s1] sm:$0x1]
        %v271 = vld [vmem:[%s2] sm:$0x1]
        %vm272 = vcmask 261120
        %v273 = vsel %vm272, %v269, 0.0
        %274 = vadd.xlane.f32.xlu0 %v273
        %v275 = vpop.xlane.xlu0 %274
        %v276 = vrcp.pop 32.0
        %v277 = vmul.f32 %v275, %v276
        %v278 = vsub.f32 %v269, %v277
        %v279 = vmul.f32 %v278, %v278
        %v280 = vsel %vm272, %v279, 0.0
        %281 = vadd.xlane.f32.xlu0 %v280
        %v282 = vpop.xlane.xlu0 %281
        %v283 = vmul.f32 %v282, %v276
        %v284 = vadd.f32 %v283, 1e-05
        %v285 = vrsqrt.pop %v284
        %v286 = vmul.f32 %v278, %v285
        %v288 = vlaneseq
        %v289 = vshrl.u32 %v288, 7
        %v290 = vsub.s32 0, %v289
        %v291 = vrot.slane %v270, %v290
        %v293 = vmul.f32 %v286, %v291
        %v295 = vlaneseq
        %v296 = vshrl.u32 %v295, 7
        %v297 = vsub.s32 0, %v296
        %v298 = vrot.slane %v271, %v297
        %v300 = vadd.f32 %v293, %v298
        %v301 = vld [vmem:[#allocation5] sm:$0xff]
        %v302 = vld [vmem:[#allocation5 + $0x8] sm:$0xff]
        %v303 = vld [vmem:[#allocation5 + $0x10] sm:$0xff]
        %v304 = vld [vmem:[#allocation5 + $0x18] sm:$0xff]
        %v306 = vsel %vm272, %v300, 0
        %308 = vmatprep.subr.mxu0 0.0
        %309 = vmatpush1.msra.mxu0 %v301
        %310 = vmatprep.subr.mxu0 0.0
        %311 = vmatpush1.msra.mxu0 %v302
        %312 = vmatprep.subr.mxu0 0.0
        %313 = vmatpush1.msra.mxu0 %v303
        %314 = vmatprep.subr.mxu0 0.0
        %315 = vmatpush1.msra.mxu0 %v304
        %316 = vmatprep.subr.mxu0 0.0
        %317 = vmatpush1.msra.mxu0 0.0
        %318 = vmatprep.subr.mxu0 0.0
        %319 = vmatpush1.msra.mxu0 0.0
        %320 = vmatprep.subr.mxu0 0.0
        %321 = vmatpush1.msra.mxu0 0.0
        %322 = vmatprep.subr.mxu0 0.0
        %323 = vmatpush1.msra.mxu0 0.0
        %324 = vmatprep.subr.mxu0 0.0
        %325 = vmatpush1.msra.mxu0 0.0
        %326 = vmatprep.subr.mxu0 0.0
        %327 = vmatpush1.msra.mxu0 0.0
        %328 = vmatprep.subr.mxu0 0.0
        %329 = vmatpush1.msra.mxu0 0.0
        %330 = vmatprep.subr.mxu0 0.0
        %331 = vmatpush1.msra.mxu0 0.0
        %332 = vmatprep.subr.mxu0 0.0
        %333 = vmatpush1.msra.mxu0 0.0
        %334 = vmatprep.subr.mxu0 0.0
        %335 = vmatpush1.msra.mxu0 0.0
        %336 = vmatprep.subr.mxu0 0.0
        %337 = vmatpush1.msra.mxu0 0.0
        %338 = vmatprep.subr.mxu0 0.0
        %339 = vmatpush1.msra.mxu0 0.0
        %340 = vmatprep.subr.mxu0 0.0
        %341 = vmatpush1.msra.mxu0 0.0
        %342 = vmatprep.subr.mxu0 0.0
        %343 = vmatpush1.msra.mxu0 0.0
        %344 = vmatprep.subr.mxu0 0.0
        %345 = vmatpush1.msra.mxu0 0.0
        %346 = vmatprep.subr.mxu0 0.0
        %347 = vmatpush1.msra.mxu0 0.0
        %348 = vmatprep.subr.mxu0 0.0
        %349 = vmatpush1.msra.mxu0 0.0
        %350 = vmatprep.subr.mxu0 0.0
        %351 = vmatpush1.msra.mxu0 0.0
        %352 = vmatprep.subr.mxu0 0.0
        %353 = vmatpush1.msra.mxu0 0.0
        %354 = vmatprep.subr.mxu0 0.0
        %355 = vmatpush1.msra.mxu0 0.0
        %356 = vmatprep.subr.mxu0 0.0
        %357 = vmatpush1.msra.mxu0 0.0
        %358 = vmatprep.subr.mxu0 0.0
        %359 = vmatpush1.msra.mxu0 0.0
        %360 = vmatprep.subr.mxu0 0.0
        %361 = vmatpush1.msra.mxu0 0.0
        %362 = vmatprep.subr.mxu0 0.0
        %363 = vmatpush1.msra.mxu0 0.0
        %364 = vmatprep.subr.mxu0 0.0
        %365 = vmatpush1.msra.mxu0 0.0
        %366 = vmatprep.subr.mxu0 0.0
        %367 = vmatpush1.msra.mxu0 0.0
        %368 = vmatprep.subr.mxu0 0.0
        %369 = vmatpush1.msra.mxu0 0.0
        %370 = vmatprep.subr.mxu0 0.0
        %371 = vmatpush1.msra.mxu0 0.0
        %372 = vmatprep.mubr.f32.mxu0 0.0
        %373 = vmatmul.mubr.f32.gmra.mrb[0].mxu0 %v306
        %v374 = vpop.f32.mrb[0].mxu0
        %v375 = vadd.f32 0.0, %v374
        %v376 = vpop.f32.mrb[0].mxu0
        %377 = vdwg.mxu0
        %379 = vrot.lane.b32.xlu0 %v375, 96
        %v380 = vpop.permute.xlu0 %379
        %vm381 = vcmask 64512
        %v382 = vsel %vm381, %v375, 0
        %v384 = vsel %vm381, %v380, 0
        %386 = vmatprep.subr.mxu0 0.0
        %387 = vmatpush1.xpose.msra.mxu0 %v384
        %388 = vmatprep.subr.mxu0 0.0
        %389 = vmatpush1.xpose.msra.mxu0 0.0
        %390 = vmatprep.subr.mxu0 0.0
        %391 = vmatpush1.xpose.msra.mxu0 0.0
        %392 = vmatprep.subr.mxu0 0.0
        %393 = vmatpush1.xpose.msra.mxu0 0.0
        %394 = vmatprep.subr.mxu0 0.0
        %395 = vmatpush1.xpose.msra.mxu0 0.0
        %396 = vmatprep.subr.mxu0 0.0
        %397 = vmatpush1.xpose.msra.mxu0 0.0
        %398 = vmatprep.subr.mxu0 0.0
        %399 = vmatpush1.xpose.msra.mxu0 0.0
        %400 = vmatprep.subr.mxu0 0.0
        %401 = vmatpush1.xpose.msra.mxu0 0.0
        %402 = vmatprep.subr.mxu0 0.0
        %403 = vmatpush1.xpose.msra.mxu0 0.0
        %404 = vmatprep.subr.mxu0 0.0
        %405 = vmatpush1.xpose.msra.mxu0 0.0
        %406 = vmatprep.subr.mxu0 0.0
        %407 = vmatpush1.xpose.msra.mxu0 0.0
        %408 = vmatprep.subr.mxu0 0.0
        %409 = vmatpush1.xpose.msra.mxu0 0.0
        %410 = vmatprep.subr.mxu0 0.0
        %411 = vmatpush1.xpose.msra.mxu0 0.0
        %412 = vmatprep.subr.mxu0 0.0
        %413 = vmatpush1.xpose.msra.mxu0 0.0
        %414 = vmatprep.subr.mxu0 0.0
        %415 = vmatpush1.xpose.msra.mxu0 0.0
        %416 = vmatprep.subr.mxu0 0.0
        %417 = vmatpush1.xpose.msra.mxu0 0.0
        %418 = vmatprep.subr.mxu0 0.0
        %419 = vmatpush1.xpose.msra.mxu0 0.0
        %420 = vmatprep.subr.mxu0 0.0
        %421 = vmatpush1.xpose.msra.mxu0 0.0
        %422 = vmatprep.subr.mxu0 0.0
        %423 = vmatpush1.xpose.msra.mxu0 0.0
        %424 = vmatprep.subr.mxu0 0.0
        %425 = vmatpush1.xpose.msra.mxu0 0.0
        %426 = vmatprep.subr.mxu0 0.0
        %427 = vmatpush1.xpose.msra.mxu0 0.0
        %428 = vmatprep.subr.mxu0 0.0
        %429 = vmatpush1.xpose.msra.mxu0 0.0
        %430 = vmatprep.subr.mxu0 0.0
        %431 = vmatpush1.xpose.msra.mxu0 0.0
        %432 = vmatprep.subr.mxu0 0.0
        %433 = vmatpush1.xpose.msra.mxu0 0.0
        %434 = vmatprep.subr.mxu0 0.0
        %435 = vmatpush1.xpose.msra.mxu0 0.0
        %436 = vmatprep.subr.mxu0 0.0
        %437 = vmatpush1.xpose.msra.mxu0 0.0
        %438 = vmatprep.subr.mxu0 0.0
        %439 = vmatpush1.xpose.msra.mxu0 0.0
        %440 = vmatprep.subr.mxu0 0.0
        %441 = vmatpush1.xpose.msra.mxu0 0.0
        %442 = vmatprep.subr.mxu0 0.0
        %443 = vmatpush1.xpose.msra.mxu0 0.0
        %444 = vmatprep.subr.mxu0 0.0
        %445 = vmatpush1.xpose.msra.mxu0 0.0
        %446 = vmatprep.subr.mxu0 0.0
        %447 = vmatpush1.xpose.msra.mxu0 0.0
        %448 = vmatprep.subr.mxu0 0.0
        %449 = vmatpush1.xpose.msra.mxu0 0.0
        %450 = vmatprep.mubr.f32.mxu0 0.0
        %451 = vmatmul.mubr.f32.gmra.mrb[0].mxu0 %v382
        %v452 = vpop.f32.mrb[0].mxu0
        %v453 = vadd.f32 0.0, %v452
        %v454 = vpop.f32.mrb[0].mxu0
        %455 = vdwg.mxu0
        %v456 = vsel %vm381, %v453, -inf
        %457 = vmax.xlane.f32.xlu0 %v456
        %v458 = vpop.xlane.xlu0 %457
        %v459 = vsub.f32 %v453, %v458
        %v460 = vmul.f32 %v459, 1.442695
        %v461 = vpow.pop %v460
        %v462 = vsel %vm381, %v461, 0.0
        %463 = vadd.xlane.f32.xlu0 %v462
        %v464 = vpop.xlane.xlu0 %463
        %v465 = vrcp.pop %v464
        %v466 = vmul.f32 %v461, %v465
        %467 = vrot.lane.b32.xlu0 %v375, 64
        %v468 = vpop.permute.xlu0 %467
        %v471 = vsel %vm381, %v466, 0
        %473 = vmatprep.subr.mxu0 0.0
        %474 = vmatpush1.msra.mxu0 %v468
        %475 = vmatprep.subr.mxu0 0.0
        %476 = vmatpush1.msra.mxu0 0.0
        %477 = vmatprep.subr.mxu0 0.0
        %478 = vmatpush1.msra.mxu0 0.0
        %479 = vmatprep.subr.mxu0 0.0
        %480 = vmatpush1.msra.mxu0 0.0
        %481 = vmatprep.subr.mxu0 0.0
        %482 = vmatpush1.msra.mxu0 0.0
        %483 = vmatprep.subr.mxu0 0.0
        %484 = vmatpush1.msra.mxu0 0.0
        %485 = vmatprep.subr.mxu0 0.0
        %486 = vmatpush1.msra.mxu0 0.0
        %487 = vmatprep.subr.mxu0 0.0
        %488 = vmatpush1.msra.mxu0 0.0
        %489 = vmatprep.subr.mxu0 0.0
        %490 = vmatpush1.msra.mxu0 0.0
        %491 = vmatprep.subr.mxu0 0.0
        %492 = vmatpush1.msra.mxu0 0.0
        %493 = vmatprep.subr.mxu0 0.0
        %494 = vmatpush1.msra.mxu0 0.0
        %495 = vmatprep.subr.mxu0 0.0
        %496 = vmatpush1.msra.mxu0 0.0
        %497 = vmatprep.subr.mxu0 0.0
        %498 = vmatpush1.msra.mxu0 0.0
        %499 = vmatprep.subr.mxu0 0.0
        %500 = vmatpush1.msra.mxu0 0.0
        %501 = vmatprep.subr.mxu0 0.0
        %502 = vmatpush1.msra.mxu0 0.0
        %503 = vmatprep.subr.mxu0 0.0
        %504 = vmatpush1.msra.mxu0 0.0
        %505 = vmatprep.subr.mxu0 0.0
        %506 = vmatpush1.msra.mxu0 0.0
        %507 = vmatprep.subr.mxu0 0.0
        %508 = vmatpush1.msra.mxu0 0.0
        %509 = vmatprep.subr.mxu0 0.0
        %510 = vmatpush1.msra.mxu0 0.0
        %511 = vmatprep.subr.mxu0 0.0
        %512 = vmatpush1.msra.mxu0 0.0
        %513 = vmatprep.subr.mxu0 0.0
        %514 = vmatpush1.msra.mxu0 0.0
        %515 = vmatprep.subr.mxu0 0.0
        %516 = vmatpush1.msra.mxu0 0.0
        %517 = vmatprep.subr.mxu0 0.0
        %518 = vmatpush1.msra.mxu0 0.0
        %519 = vmatprep.subr.mxu0 0.0
        %520 = vmatpush1.msra.mxu0 0.0
        %521 = vmatprep.subr.mxu0 0.0
        %522 = vmatpush1.msra.mxu0 0.0
        %523 = vmatprep.subr.mxu0 0.0
        %524 = vmatpush1.msra.mxu0 0.0
        %525 = vmatprep.subr.mxu0 0.0
        %526 = vmatpush1.msra.mxu0 0.0
        %527 = vmatprep.subr.mxu0 0.0
        %528 = vmatpush1.msra.mxu0 0.0
        %529 = vmatprep.subr.mxu0 0.0
        %530 = vmatpush1.msra.mxu0 0.0
        %531 = vmatprep.subr.mxu0 0.0
        %532 = vmatpush1.msra.mxu0 0.0
        %533 = vmatprep.subr.mxu0 0.0
        %534 = vmatpush1.msra.mxu0 0.0
        %535 = vmatprep.subr.mxu0 0.0
        %536 = vmatpush1.msra.mxu0 0.0
        %537 = vmatprep.mubr.f32.mxu0 0.0
        %538 = vmatmul.mubr.f32.gmra.mrb[0].mxu0 %v471
        %v539 = vpop.f32.mrb[0].mxu0
        %v540 = vadd.f32 0.0, %v539
        %v541 = vpop.f32.mrb[0].mxu0
        %542 = vdwg.mxu0
        %v543 = vld [vmem:[#allocation7] sm:$0xff]
        %544 = vrot.lane.b32.xlu0 %v375, 120
        %v545 = vpop.permute.xlu0 %544
        %546 = vrot.lane.b32.xlu0 %v375, 88
        %v547 = vpop.permute.xlu0 %546
        %v548 = vsel %vm381, %v545, 0
        %v550 = vsel %vm381, %v547, 0
        %552 = vmatprep.subr.mxu0 0.0
        %553 = vmatpush1.xpose.msra.mxu0 %v550
        %554 = vmatprep.subr.mxu0 0.0
        %555 = vmatpush1.xpose.msra.mxu0 0.0
        %556 = vmatprep.subr.mxu0 0.0
        %557 = vmatpush1.xpose.msra.mxu0 0.0
        %558 = vmatprep.subr.mxu0 0.0
        %559 = vmatpush1.xpose.msra.mxu0 0.0
        %560 = vmatprep.subr.mxu0 0.0
        %561 = vmatpush1.xpose.msra.mxu0 0.0
        %562 = vmatprep.subr.mxu0 0.0
        %563 = vmatpush1.xpose.msra.mxu0 0.0
        %564 = vmatprep.subr.mxu0 0.0
        %565 = vmatpush1.xpose.msra.mxu0 0.0
        %566 = vmatprep.subr.mxu0 0.0
        %567 = vmatpush1.xpose.msra.mxu0 0.0
        %568 = vmatprep.subr.mxu0 0.0
        %569 = vmatpush1.xpose.msra.mxu0 0.0
        %570 = vmatprep.subr.mxu0 0.0
        %571 = vmatpush1.xpose.msra.mxu0 0.0
        %572 = vmatprep.subr.mxu0 0.0
        %573 = vmatpush1.xpose.msra.mxu0 0.0
        %574 = vmatprep.subr.mxu0 0.0
        %575 = vmatpush1.xpose.msra.mxu0 0.0
        %576 = vmatprep.subr.mxu0 0.0
        %577 = vmatpush1.xpose.msra.mxu0 0.0
        %578 = vmatprep.subr.mxu0 0.0
        %579 = vmatpush1.xpose.msra.mxu0 0.0
        %580 = vmatprep.subr.mxu0 0.0
        %581 = vmatpush1.xpose.msra.mxu0 0.0
        %582 = vmatprep.subr.mxu0 0.0
        %583 = vmatpush1.xpose.msra.mxu0 0.0
        %584 = vmatprep.subr.mxu0 0.0
        %585 = vmatpush1.xpose.msra.mxu0 0.0
        %586 = vmatprep.subr.mxu0 0.0
        %587 = vmatpush1.xpose.msra.mxu0 0.0
        %588 = vmatprep.subr.mxu0 0.0
        %589 = vmatpush1.xpose.msra.mxu0 0.0
        %590 = vmatprep.subr.mxu0 0.0
        %591 = vmatpush1.xpose.msra.mxu0 0.0
        %592 = vmatprep.subr.mxu0 0.0
        %593 = vmatpush1.xpose.msra.mxu0 0.0
        %594 = vmatprep.subr.mxu0 0.0
        %595 = vmatpush1.xpose.msra.mxu0 0.0
        %596 = vmatprep.subr.mxu0 0.0
        %597 = vmatpush1.xpose.msra.mxu0 0.0
        %598 = vmatprep.subr.mxu0 0.0
        %599 = vmatpush1.xpose.msra.mxu0 0.0
        %600 = vmatprep.subr.mxu0 0.0
        %601 = vmatpush1.xpose.msra.mxu0 0.0
        %602 = vmatprep.subr.mxu0 0.0
        %603 = vmatpush1.xpose.msra.mxu0 0.0
        %604 = vmatprep.subr.mxu0 0.0
        %605 = vmatpush1.xpose.msra.mxu0 0.0
        %606 = vmatprep.subr.mxu0 0.0
        %607 = vmatpush1.xpose.msra.mxu0 0.0
        %608 = vmatprep.subr.mxu0 0.0
        %609 = vmatpush1.xpose.msra.mxu0 0.0
        %610 = vmatprep.subr.mxu0 0.0
        %611 = vmatpush1.xpose.msra.mxu0 0.0
        %612 = vmatprep.subr.mxu0 0.0
        %613 = vmatpush1.xpose.msra.mxu0 0.0
        %614 = vmatprep.subr.mxu0 0.0
        %615 = vmatpush1.xpose.msra.mxu0 0.0
        %616 = vmatprep.mubr.f32.mxu0 0.0
        %617 = vmatmul.mubr.f32.gmra.mrb[0].mxu0 %v548
        %v618 = vpop.f32.mrb[0].mxu0
        %v619 = vadd.f32 0.0, %v618
        %v620 = vpop.f32.mrb[0].mxu0
        %621 = vdwg.mxu0
        %v622 = vsel %vm381, %v619, -inf
        %623 = vmax.xlane.f32.xlu0 %v622
        %v624 = vpop.xlane.xlu0 %623
        %v625 = vsub.f32 %v619, %v624
        %v626 = vmul.f32 %v625, 1.442695
        %v627 = vpow.pop %v626
        %v628 = vsel %vm381, %v627, 0.0
        %629 = vadd.xlane.f32.xlu0 %v628
        %v630 = vpop.xlane.xlu0 %629
        %v631 = vrcp.pop %v630
        %v632 = vmul.f32 %v627, %v631
        %633 = vrot.lane.b32.xlu0 %v375, 56
        %v634 = vpop.permute.xlu0 %633
        %v637 = vsel %vm381, %v632, 0
        %639 = vmatprep.subr.mxu0 0.0
        %640 = vmatpush1.msra.mxu0 %v634
        %641 = vmatprep.subr.mxu0 0.0
        %642 = vmatpush1.msra.mxu0 0.0
        %643 = vmatprep.subr.mxu0 0.0
        %644 = vmatpush1.msra.mxu0 0.0
        %645 = vmatprep.subr.mxu0 0.0
        %646 = vmatpush1.msra.mxu0 0.0
        %647 = vmatprep.subr.mxu0 0.0
        %648 = vmatpush1.msra.mxu0 0.0
        %649 = vmatprep.subr.mxu0 0.0
        %650 = vmatpush1.msra.mxu0 0.0
        %651 = vmatprep.subr.mxu0 0.0
        %652 = vmatpush1.msra.mxu0 0.0
        %653 = vmatprep.subr.mxu0 0.0
        %654 = vmatpush1.msra.mxu0 0.0
        %655 = vmatprep.subr.mxu0 0.0
        %656 = vmatpush1.msra.mxu0 0.0
        %657 = vmatprep.subr.mxu0 0.0
        %658 = vmatpush1.msra.mxu0 0.0
        %659 = vmatprep.subr.mxu0 0.0
        %660 = vmatpush1.msra.mxu0 0.0
        %661 = vmatprep.subr.mxu0 0.0
        %662 = vmatpush1.msra.mxu0 0.0
        %663 = vmatprep.subr.mxu0 0.0
        %664 = vmatpush1.msra.mxu0 0.0
        %665 = vmatprep.subr.mxu0 0.0
        %666 = vmatpush1.msra.mxu0 0.0
        %667 = vmatprep.subr.mxu0 0.0
        %668 = vmatpush1.msra.mxu0 0.0
        %669 = vmatprep.subr.mxu0 0.0
        %670 = vmatpush1.msra.mxu0 0.0
        %671 = vmatprep.subr.mxu0 0.0
        %672 = vmatpush1.msra.mxu0 0.0
        %673 = vmatprep.subr.mxu0 0.0
        %674 = vmatpush1.msra.mxu0 0.0
        %675 = vmatprep.subr.mxu0 0.0
        %676 = vmatpush1.msra.mxu0 0.0
        %677 = vmatprep.subr.mxu0 0.0
        %678 = vmatpush1.msra.mxu0 0.0
        %679 = vmatprep.subr.mxu0 0.0
        %680 = vmatpush1.msra.mxu0 0.0
        %681 = vmatprep.subr.mxu0 0.0
        %682 = vmatpush1.msra.mxu0 0.0
        %683 = vmatprep.subr.mxu0 0.0
        %684 = vmatpush1.msra.mxu0 0.0
        %685 = vmatprep.subr.mxu0 0.0
        %686 = vmatpush1.msra.mxu0 0.0
        %687 = vmatprep.subr.mxu0 0.0
        %688 = vmatpush1.msra.mxu0 0.0
        %689 = vmatprep.subr.mxu0 0.0
        %690 = vmatpush1.msra.mxu0 0.0
        %691 = vmatprep.subr.mxu0 0.0
        %692 = vmatpush1.msra.mxu0 0.0
        %693 = vmatprep.subr.mxu0 0.0
        %694 = vmatpush1.msra.mxu0 0.0
        %695 = vmatprep.subr.mxu0 0.0
        %696 = vmatpush1.msra.mxu0 0.0
        %697 = vmatprep.subr.mxu0 0.0
        %698 = vmatpush1.msra.mxu0 0.0
        %699 = vmatprep.subr.mxu0 0.0
        %700 = vmatpush1.msra.mxu0 0.0
        %701 = vmatprep.subr.mxu0 0.0
        %702 = vmatpush1.msra.mxu0 0.0
        %703 = vmatprep.mubr.f32.mxu0 0.0
        %704 = vmatmul.mubr.f32.gmra.mrb[0].mxu0 %v637
        %v705 = vpop.f32.mrb[0].mxu0
        %v706 = vadd.f32 0.0, %v705
        %v707 = vpop.f32.mrb[0].mxu0
        %708 = vdwg.mxu0
        %v709 = vld [vmem:[#allocation7 + $0x8] sm:$0xff]
        %v711 = vsel %vm381, %v706, 0
        %713 = vmatprep.subr.mxu0 0.0
        %714 = vmatpush1.msra.mxu0 %v709
        %715 = vmatprep.subr.mxu0 0.0
        %716 = vmatpush1.msra.mxu0 0.0
        %717 = vmatprep.subr.mxu0 0.0
        %718 = vmatpush1.msra.mxu0 0.0
        %719 = vmatprep.subr.mxu0 0.0
        %720 = vmatpush1.msra.mxu0 0.0
        %721 = vmatprep.subr.mxu0 0.0
        %722 = vmatpush1.msra.mxu0 0.0
        %723 = vmatprep.subr.mxu0 0.0
        %724 = vmatpush1.msra.mxu0 0.0
        %725 = vmatprep.subr.mxu0 0.0
        %726 = vmatpush1.msra.mxu0 0.0
        %727 = vmatprep.subr.mxu0 0.0
        %728 = vmatpush1.msra.mxu0 0.0
        %729 = vmatprep.subr.mxu0 0.0
        %730 = vmatpush1.msra.mxu0 0.0
        %731 = vmatprep.subr.mxu0 0.0
        %732 = vmatpush1.msra.mxu0 0.0
        %733 = vmatprep.subr.mxu0 0.0
        %734 = vmatpush1.msra.mxu0 0.0
        %735 = vmatprep.subr.mxu0 0.0
        %736 = vmatpush1.msra.mxu0 0.0
        %737 = vmatprep.subr.mxu0 0.0
        %738 = vmatpush1.msra.mxu0 0.0
        %739 = vmatprep.subr.mxu0 0.0
        %740 = vmatpush1.msra.mxu0 0.0
        %741 = vmatprep.subr.mxu0 0.0
        %742 = vmatpush1.msra.mxu0 0.0
        %743 = vmatprep.subr.mxu0 0.0
        %744 = vmatpush1.msra.mxu0 0.0
        %745 = vmatprep.subr.mxu0 0.0
        %746 = vmatpush1.msra.mxu0 0.0
        %747 = vmatprep.subr.mxu0 0.0
        %748 = vmatpush1.msra.mxu0 0.0
        %749 = vmatprep.subr.mxu0 0.0
        %750 = vmatpush1.msra.mxu0 0.0
        %751 = vmatprep.subr.mxu0 0.0
        %752 = vmatpush1.msra.mxu0 0.0
        %753 = vmatprep.subr.mxu0 0.0
        %754 = vmatpush1.msra.mxu0 0.0
        %755 = vmatprep.subr.mxu0 0.0
        %756 = vmatpush1.msra.mxu0 0.0
        %757 = vmatprep.subr.mxu0 0.0
        %758 = vmatpush1.msra.mxu0 0.0
        %759 = vmatprep.subr.mxu0 0.0
        %760 = vmatpush1.msra.mxu0 0.0
        %761 = vmatprep.subr.mxu0 0.0
        %762 = vmatpush1.msra.mxu0 0.0
        %763 = vmatprep.subr.mxu0 0.0
        %764 = vmatpush1.msra.mxu0 0.0
        %765 = vmatprep.subr.mxu0 0.0
        %766 = vmatpush1.msra.mxu0 0.0
        %767 = vmatprep.subr.mxu0 0.0
        %768 = vmatpush1.msra.mxu0 0.0
        %769 = vmatprep.subr.mxu0 0.0
        %770 = vmatpush1.msra.mxu0 0.0
        %771 = vmatprep.subr.mxu0 0.0
        %772 = vmatpush1.msra.mxu0 0.0
        %773 = vmatprep.subr.mxu0 0.0
        %774 = vmatpush1.msra.mxu0 0.0
        %775 = vmatprep.subr.mxu0 0.0
        %776 = vmatpush1.msra.mxu0 0.0
        %777 = vmatprep.mubr.f32.mxu0 0.0
        %778 = vmatmul.mubr.f32.gmra.mrb[0].mxu0 %v711
        %v779 = vpop.f32.mrb[0].mxu0
        %v780 = vadd.f32 0.0, %v779
        %v781 = vpop.f32.mrb[0].mxu0
        %782 = vdwg.mxu0
        %v784 = vsel %vm381, %v540, 0
        %786 = vmatprep.subr.mxu0 0.0
        %787 = vmatpush1.msra.mxu0 %v543
        %788 = vmatprep.subr.mxu0 0.0
        %789 = vmatpush1.msra.mxu0 0.0
        %790 = vmatprep.subr.mxu0 0.0
        %791 = vmatpush1.msra.mxu0 0.0
        %792 = vmatprep.subr.mxu0 0.0
        %793 = vmatpush1.msra.mxu0 0.0
        %794 = vmatprep.subr.mxu0 0.0
        %795 = vmatpush1.msra.mxu0 0.0
        %796 = vmatprep.subr.mxu0 0.0
        %797 = vmatpush1.msra.mxu0 0.0
        %798 = vmatprep.subr.mxu0 0.0
        %799 = vmatpush1.msra.mxu0 0.0
        %800 = vmatprep.subr.mxu0 0.0
        %801 = vmatpush1.msra.mxu0 0.0
        %802 = vmatprep.subr.mxu0 0.0
        %803 = vmatpush1.msra.mxu0 0.0
        %804 = vmatprep.subr.mxu0 0.0
        %805 = vmatpush1.msra.mxu0 0.0
        %806 = vmatprep.subr.mxu0 0.0
        %807 = vmatpush1.msra.mxu0 0.0
        %808 = vmatprep.subr.mxu0 0.0
        %809 = vmatpush1.msra.mxu0 0.0
        %810 = vmatprep.subr.mxu0 0.0
        %811 = vmatpush1.msra.mxu0 0.0
        %812 = vmatprep.subr.mxu0 0.0
        %813 = vmatpush1.msra.mxu0 0.0
        %814 = vmatprep.subr.mxu0 0.0
        %815 = vmatpush1.msra.mxu0 0.0
        %816 = vmatprep.subr.mxu0 0.0
        %817 = vmatpush1.msra.mxu0 0.0
        %818 = vmatprep.subr.mxu0 0.0
        %819 = vmatpush1.msra.mxu0 0.0
        %820 = vmatprep.subr.mxu0 0.0
        %821 = vmatpush1.msra.mxu0 0.0
        %822 = vmatprep.subr.mxu0 0.0
        %823 = vmatpush1.msra.mxu0 0.0
        %824 = vmatprep.subr.mxu0 0.0
        %825 = vmatpush1.msra.mxu0 0.0
        %826 = vmatprep.subr.mxu0 0.0
        %827 = vmatpush1.msra.mxu0 0.0
        %828 = vmatprep.subr.mxu0 0.0
        %829 = vmatpush1.msra.mxu0 0.0
        %830 = vmatprep.subr.mxu0 0.0
        %831 = vmatpush1.msra.mxu0 0.0
        %832 = vmatprep.subr.mxu0 0.0
        %833 = vmatpush1.msra.mxu0 0.0
        %834 = vmatprep.subr.mxu0 0.0
        %835 = vmatpush1.msra.mxu0 0.0
        %836 = vmatprep.subr.mxu0 0.0
        %837 = vmatpush1.msra.mxu0 0.0
        %838 = vmatprep.subr.mxu0 0.0
        %839 = vmatpush1.msra.mxu0 0.0
        %840 = vmatprep.subr.mxu0 0.0
        %841 = vmatpush1.msra.mxu0 0.0
        %842 = vmatprep.subr.mxu0 0.0
        %843 = vmatpush1.msra.mxu0 0.0
        %844 = vmatprep.subr.mxu0 0.0
        %845 = vmatpush1.msra.mxu0 0.0
        %846 = vmatprep.subr.mxu0 0.0
        %847 = vmatpush1.msra.mxu0 0.0
        %848 = vmatprep.subr.mxu0 0.0
        %849 = vmatpush1.msra.mxu0 0.0
        %850 = vmatprep.mubr.f32.mxu0 0.0
        %851 = vmatmul.mubr.f32.gmra.mrb[0].mxu0 %v784
        %v852 = vpop.f32.mrb[0].mxu0
        %v853 = vadd.f32 %v780, %v852
        %v854 = vpop.f32.mrb[0].mxu0
        %855 = vdwg.mxu0
        %856 = vrot.lane.b32.xlu0 %v375, 112
        %v857 = vpop.permute.xlu0 %856
        %858 = vrot.lane.b32.xlu0 %v375, 80
        %v859 = vpop.permute.xlu0 %858
        %v860 = vsel %vm381, %v857, 0
        %v862 = vsel %vm381, %v859, 0
        %864 = vmatprep.subr.mxu0 0.0
        %865 = vmatpush1.xpose.msra.mxu0 %v862
        %866 = vmatprep.subr.mxu0 0.0
        %867 = vmatpush1.xpose.msra.mxu0 0.0
        %868 = vmatprep.subr.mxu0 0.0
        %869 = vmatpush1.xpose.msra.mxu0 0.0
        %870 = vmatprep.subr.mxu0 0.0
        %871 = vmatpush1.xpose.msra.mxu0 0.0
        %872 = vmatprep.subr.mxu0 0.0
        %873 = vmatpush1.xpose.msra.mxu0 0.0
        %874 = vmatprep.subr.mxu0 0.0
        %875 = vmatpush1.xpose.msra.mxu0 0.0
        %876 = vmatprep.subr.mxu0 0.0
        %877 = vmatpush1.xpose.msra.mxu0 0.0
        %878 = vmatprep.subr.mxu0 0.0
        %879 = vmatpush1.xpose.msra.mxu0 0.0
        %880 = vmatprep.subr.mxu0 0.0
        %881 = vmatpush1.xpose.msra.mxu0 0.0
        %882 = vmatprep.subr.mxu0 0.0
        %883 = vmatpush1.xpose.msra.mxu0 0.0
        %884 = vmatprep.subr.mxu0 0.0
        %885 = vmatpush1.xpose.msra.mxu0 0.0
        %886 = vmatprep.subr.mxu0 0.0
        %887 = vmatpush1.xpose.msra.mxu0 0.0
        %888 = vmatprep.subr.mxu0 0.0
        %889 = vmatpush1.xpose.msra.mxu0 0.0
        %890 = vmatprep.subr.mxu0 0.0
        %891 = vmatpush1.xpose.msra.mxu0 0.0
        %892 = vmatprep.subr.mxu0 0.0
        %893 = vmatpush1.xpose.msra.mxu0 0.0
        %894 = vmatprep.subr.mxu0 0.0
        %895 = vmatpush1.xpose.msra.mxu0 0.0
        %896 = vmatprep.subr.mxu0 0.0
        %897 = vmatpush1.xpose.msra.mxu0 0.0
        %898 = vmatprep.subr.mxu0 0.0
        %899 = vmatpush1.xpose.msra.mxu0 0.0
        %900 = vmatprep.subr.mxu0 0.0
        %901 = vmatpush1.xpose.msra.mxu0 0.0
        %902 = vmatprep.subr.mxu0 0.0
        %903 = vmatpush1.xpose.msra.mxu0 0.0
        %904 = vmatprep.subr.mxu0 0.0
        %905 = vmatpush1.xpose.msra.mxu0 0.0
        %906 = vmatprep.subr.mxu0 0.0
        %907 = vmatpush1.xpose.msra.mxu0 0.0
        %908 = vmatprep.subr.mxu0 0.0
        %909 = vmatpush1.xpose.msra.mxu0 0.0
        %910 = vmatprep.subr.mxu0 0.0
        %911 = vmatpush1.xpose.msra.mxu0 0.0
        %912 = vmatprep.subr.mxu0 0.0
        %913 = vmatpush1.xpose.msra.mxu0 0.0
        %914 = vmatprep.subr.mxu0 0.0
        %915 = vmatpush1.xpose.msra.mxu0 0.0
        %916 = vmatprep.subr.mxu0 0.0
        %917 = vmatpush1.xpose.msra.mxu0 0.0
        %918 = vmatprep.subr.mxu0 0.0
        %919 = vmatpush1.xpose.msra.mxu0 0.0
        %920 = vmatprep.subr.mxu0 0.0
        %921 = vmatpush1.xpose.msra.mxu0 0.0
        %922 = vmatprep.subr.mxu0 0.0
        %923 = vmatpush1.xpose.msra.mxu0 0.0
        %924 = vmatprep.subr.mxu0 0.0
        %925 = vmatpush1.xpose.msra.mxu0 0.0
        %926 = vmatprep.subr.mxu0 0.0
        %927 = vmatpush1.xpose.msra.mxu0 0.0
        %928 = vmatprep.mubr.f32.mxu0 0.0
        %929 = vmatmul.mubr.f32.gmra.mrb[0].mxu0 %v860
        %v930 = vpop.f32.mrb[0].mxu0
        %v931 = vadd.f32 0.0, %v930
        %v932 = vpop.f32.mrb[0].mxu0
        %933 = vdwg.mxu0
        %v934 = vsel %vm381, %v931, -inf
        %935 = vmax.xlane.f32.xlu0 %v934
        %v936 = vpop.xlane.xlu0 %935
        %v937 = vsub.f32 %v931, %v936
        %v938 = vmul.f32 %v937, 1.442695
        %v939 = vpow.pop %v938
        %v940 = vsel %vm381, %v939, 0.0
        %941 = vadd.xlane.f32.xlu0 %v940
        %v942 = vpop.xlane.xlu0 %941
        %v943 = vrcp.pop %v942
        %v944 = vmul.f32 %v939, %v943
        %945 = vrot.lane.b32.xlu0 %v375, 48
        %v946 = vpop.permute.xlu0 %945
        %v949 = vsel %vm381, %v944, 0
        %951 = vmatprep.subr.mxu0 0.0
        %952 = vmatpush1.msra.mxu0 %v946
        %953 = vmatprep.subr.mxu0 0.0
        %954 = vmatpush1.msra.mxu0 0.0
        %955 = vmatprep.subr.mxu0 0.0
        %956 = vmatpush1.msra.mxu0 0.0
        %957 = vmatprep.subr.mxu0 0.0
        %958 = vmatpush1.msra.mxu0 0.0
        %959 = vmatprep.subr.mxu0 0.0
        %960 = vmatpush1.msra.mxu0 0.0
        %961 = vmatprep.subr.mxu0 0.0
        %962 = vmatpush1.msra.mxu0 0.0
        %963 = vmatprep.subr.mxu0 0.0
        %964 = vmatpush1.msra.mxu0 0.0
        %965 = vmatprep.subr.mxu0 0.0
        %966 = vmatpush1.msra.mxu0 0.0
        %967 = vmatprep.subr.mxu0 0.0
        %968 = vmatpush1.msra.mxu0 0.0
        %969 = vmatprep.subr.mxu0 0.0
        %970 = vmatpush1.msra.mxu0 0.0
        %971 = vmatprep.subr.mxu0 0.0
        %972 = vmatpush1.msra.mxu0 0.0
        %973 = vmatprep.subr.mxu0 0.0
        %974 = vmatpush1.msra.mxu0 0.0
        %975 = vmatprep.subr.mxu0 0.0
        %976 = vmatpush1.msra.mxu0 0.0
        %977 = vmatprep.subr.mxu0 0.0
        %978 = vmatpush1.msra.mxu0 0.0
        %979 = vmatprep.subr.mxu0 0.0
        %980 = vmatpush1.msra.mxu0 0.0
        %981 = vmatprep.subr.mxu0 0.0
        %982 = vmatpush1.msra.mxu0 0.0
        %983 = vmatprep.subr.mxu0 0.0
        %984 = vmatpush1.msra.mxu0 0.0
        %985 = vmatprep.subr.mxu0 0.0
        %986 = vmatpush1.msra.mxu0 0.0
        %987 = vmatprep.subr.mxu0 0.0
        %988 = vmatpush1.msra.mxu0 0.0
        %989 = vmatprep.subr.mxu0 0.0
        %990 = vmatpush1.msra.mxu0 0.0
        %991 = vmatprep.subr.mxu0 0.0
        %992 = vmatpush1.msra.mxu0 0.0
        %993 = vmatprep.subr.mxu0 0.0
        %994 = vmatpush1.msra.mxu0 0.0
        %995 = vmatprep.subr.mxu0 0.0
        %996 = vmatpush1.msra.mxu0 0.0
        %997 = vmatprep.subr.mxu0 0.0
        %998 = vmatpush1.msra.mxu0 0.0
        %999 = vmatprep.subr.mxu0 0.0
        %1000 = vmatpush1.msra.mxu0 0.0
        %1001 = vmatprep.subr.mxu0 0.0
        %1002 = vmatpush1.msra.mxu0 0.0
        %1003 = vmatprep.subr.mxu0 0.0
        %1004 = vmatpush1.msra.mxu0 0.0
        %1005 = vmatprep.subr.mxu0 0.0
        %1006 = vmatpush1.msra.mxu0 0.0
        %1007 = vmatprep.subr.mxu0 0.0
        %1008 = vmatpush1.msra.mxu0 0.0
        %1009 = vmatprep.subr.mxu0 0.0
        %1010 = vmatpush1.msra.mxu0 0.0
        %1011 = vmatprep.subr.mxu0 0.0
        %1012 = vmatpush1.msra.mxu0 0.0
        %1013 = vmatprep.subr.mxu0 0.0
        %1014 = vmatpush1.msra.mxu0 0.0
        %1015 = vmatprep.mubr.f32.mxu0 0.0
        %1016 = vmatmul.mubr.f32.gmra.mrb[0].mxu0 %v949
        %v1017 = vpop.f32.mrb[0].mxu0
        %v1018 = vadd.f32 0.0, %v1017
        %v1019 = vpop.f32.mrb[0].mxu0
        %1020 = vdwg.mxu0
        %v1021 = vld [vmem:[#allocation7 + $0x10] sm:$0xff]
        %v1023 = vsel %vm381, %v1018, 0
        %1025 = vmatprep.subr.mxu0 0.0
        %1026 = vmatpush1.msra.mxu0 %v1021
        %1027 = vmatprep.subr.mxu0 0.0
        %1028 = vmatpush1.msra.mxu0 0.0
        %1029 = vmatprep.subr.mxu0 0.0
        %1030 = vmatpush1.msra.mxu0 0.0
        %1031 = vmatprep.subr.mxu0 0.0
        %1032 = vmatpush1.msra.mxu0 0.0
        %1033 = vmatprep.subr.mxu0 0.0
        %1034 = vmatpush1.msra.mxu0 0.0
        %1035 = vmatprep.subr.mxu0 0.0
        %1036 = vmatpush1.msra.mxu0 0.0
        %1037 = vmatprep.subr.mxu0 0.0
        %1038 = vmatpush1.msra.mxu0 0.0
        %1039 = vmatprep.subr.mxu0 0.0
        %1040 = vmatpush1.msra.mxu0 0.0
        %1041 = vmatprep.subr.mxu0 0.0
        %1042 = vmatpush1.msra.mxu0 0.0
        %1043 = vmatprep.subr.mxu0 0.0
        %1044 = vmatpush1.msra.mxu0 0.0
        %1045 = vmatprep.subr.mxu0 0.0
        %1046 = vmatpush1.msra.mxu0 0.0
        %1047 = vmatprep.subr.mxu0 0.0
        %1048 = vmatpush1.msra.mxu0 0.0
        %1049 = vmatprep.subr.mxu0 0.0
        %1050 = vmatpush1.msra.mxu0 0.0
        %1051 = vmatprep.subr.mxu0 0.0
        %1052 = vmatpush1.msra.mxu0 0.0
        %1053 = vmatprep.subr.mxu0 0.0
        %1054 = vmatpush1.msra.mxu0 0.0
        %1055 = vmatprep.subr.mxu0 0.0
        %1056 = vmatpush1.msra.mxu0 0.0
        %1057 = vmatprep.subr.mxu0 0.0
        %1058 = vmatpush1.msra.mxu0 0.0
        %1059 = vmatprep.subr.mxu0 0.0
        %1060 = vmatpush1.msra.mxu0 0.0
        %1061 = vmatprep.subr.mxu0 0.0
        %1062 = vmatpush1.msra.mxu0 0.0
        %1063 = vmatprep.subr.mxu0 0.0
        %1064 = vmatpush1.msra.mxu0 0.0
        %1065 = vmatprep.subr.mxu0 0.0
        %1066 = vmatpush1.msra.mxu0 0.0
        %1067 = vmatprep.subr.mxu0 0.0
        %1068 = vmatpush1.msra.mxu0 0.0
        %1069 = vmatprep.subr.mxu0 0.0
        %1070 = vmatpush1.msra.mxu0 0.0
        %1071 = vmatprep.subr.mxu0 0.0
        %1072 = vmatpush1.msra.mxu0 0.0
        %1073 = vmatprep.subr.mxu0 0.0
        %1074 = vmatpush1.msra.mxu0 0.0
        %1075 = vmatprep.subr.mxu0 0.0
        %1076 = vmatpush1.msra.mxu0 0.0
        %1077 = vmatprep.subr.mxu0 0.0
        %1078 = vmatpush1.msra.mxu0 0.0
        %1079 = vmatprep.subr.mxu0 0.0
        %1080 = vmatpush1.msra.mxu0 0.0
        %1081 = vmatprep.subr.mxu0 0.0
        %1082 = vmatpush1.msra.mxu0 0.0
        %1083 = vmatprep.subr.mxu0 0.0
        %1084 = vmatpush1.msra.mxu0 0.0
        %1085 = vmatprep.subr.mxu0 0.0
        %1086 = vmatpush1.msra.mxu0 0.0
        %1087 = vmatprep.subr.mxu0 0.0
        %1088 = vmatpush1.msra.mxu0 0.0
        %1089 = vmatprep.mubr.f32.mxu0 0.0
        %1090 = vmatmul.mubr.f32.gmra.mrb[0].mxu0 %v1023
        %v1091 = vpop.f32.mrb[0].mxu0
        %v1092 = vadd.f32 0.0, %v1091
        %v1093 = vpop.f32.mrb[0].mxu0
        %1094 = vdwg.mxu0
        %v1095 = vadd.f32 %v853, %v1092
        %1096 = vrot.lane.b32.xlu0 %v375, 104
        %v1097 = vpop.permute.xlu0 %1096
        %1098 = vrot.lane.b32.xlu0 %v375, 72
        %v1099 = vpop.permute.xlu0 %1098
        %v1100 = vsel %vm381, %v1097, 0
        %v1102 = vsel %vm381, %v1099, 0
        %1104 = vmatprep.subr.mxu0 0.0
        %1105 = vmatpush1.xpose.msra.mxu0 %v1102
        %1106 = vmatprep.subr.mxu0 0.0
        %1107 = vmatpush1.xpose.msra.mxu0 0.0
        %1108 = vmatprep.subr.mxu0 0.0
        %1109 = vmatpush1.xpose.msra.mxu0 0.0
        %1110 = vmatprep.subr.mxu0 0.0
        %1111 = vmatpush1.xpose.msra.mxu0 0.0
        %1112 = vmatprep.subr.mxu0 0.0
        %1113 = vmatpush1.xpose.msra.mxu0 0.0
        %1114 = vmatprep.subr.mxu0 0.0
        %1115 = vmatpush1.xpose.msra.mxu0 0.0
        %1116 = vmatprep.subr.mxu0 0.0
        %1117 = vmatpush1.xpose.msra.mxu0 0.0
        %1118 = vmatprep.subr.mxu0 0.0
        %1119 = vmatpush1.xpose.msra.mxu0 0.0
        %1120 = vmatprep.subr.mxu0 0.0
        %1121 = vmatpush1.xpose.msra.mxu0 0.0
        %1122 = vmatprep.subr.mxu0 0.0
        %1123 = vmatpush1.xpose.msra.mxu0 0.0
        %1124 = vmatprep.subr.mxu0 0.0
        %1125 = vmatpush1.xpose.msra.mxu0 0.0
        %1126 = vmatprep.subr.mxu0 0.0
        %1127 = vmatpush1.xpose.msra.mxu0 0.0
        %1128 = vmatprep.subr.mxu0 0.0
        %1129 = vmatpush1.xpose.msra.mxu0 0.0
        %1130 = vmatprep.subr.mxu0 0.0
        %1131 = vmatpush1.xpose.msra.mxu0 0.0
        %1132 = vmatprep.subr.mxu0 0.0
        %1133 = vmatpush1.xpose.msra.mxu0 0.0
        %1134 = vmatprep.subr.mxu0 0.0
        %1135 = vmatpush1.xpose.msra.mxu0 0.0
        %1136 = vmatprep.subr.mxu0 0.0
        %1137 = vmatpush1.xpose.msra.mxu0 0.0
        %1138 = vmatprep.subr.mxu0 0.0
        %1139 = vmatpush1.xpose.msra.mxu0 0.0
        %1140 = vmatprep.subr.mxu0 0.0
        %1141 = vmatpush1.xpose.msra.mxu0 0.0
        %1142 = vmatprep.subr.mxu0 0.0
        %1143 = vmatpush1.xpose.msra.mxu0 0.0
        %1144 = vmatprep.subr.mxu0 0.0
        %1145 = vmatpush1.xpose.msra.mxu0 0.0
        %1146 = vmatprep.subr.mxu0 0.0
        %1147 = vmatpush1.xpose.msra.mxu0 0.0
        %1148 = vmatprep.subr.mxu0 0.0
        %1149 = vmatpush1.xpose.msra.mxu0 0.0
        %1150 = vmatprep.subr.mxu0 0.0
        %1151 = vmatpush1.xpose.msra.mxu0 0.0
        %1152 = vmatprep.subr.mxu0 0.0
        %1153 = vmatpush1.xpose.msra.mxu0 0.0
        %1154 = vmatprep.subr.mxu0 0.0
        %1155 = vmatpush1.xpose.msra.mxu0 0.0
        %1156 = vmatprep.subr.mxu0 0.0
        %1157 = vmatpush1.xpose.msra.mxu0 0.0
        %1158 = vmatprep.subr.mxu0 0.0
        %1159 = vmatpush1.xpose.msra.mxu0 0.0
        %1160 = vmatprep.subr.mxu0 0.0
        %1161 = vmatpush1.xpose.msra.mxu0 0.0
        %1162 = vmatprep.subr.mxu0 0.0
        %1163 = vmatpush1.xpose.msra.mxu0 0.0
        %1164 = vmatprep.subr.mxu0 0.0
        %1165 = vmatpush1.xpose.msra.mxu0 0.0
        %1166 = vmatprep.subr.mxu0 0.0
        %1167 = vmatpush1.xpose.msra.mxu0 0.0
        %1168 = vmatprep.mubr.f32.mxu0 0.0
        %1169 = vmatmul.mubr.f32.gmra.mrb[0].mxu0 %v1100
        %v1170 = vpop.f32.mrb[0].mxu0
        %v1171 = vadd.f32 0.0, %v1170
        %v1172 = vpop.f32.mrb[0].mxu0
        %1173 = vdwg.mxu0
        %v1174 = vsel %vm381, %v1171, -inf
        %1175 = vmax.xlane.f32.xlu0 %v1174
        %v1176 = vpop.xlane.xlu0 %1175
        %v1177 = vsub.f32 %v1171, %v1176
        %v1178 = vmul.f32 %v1177, 1.442695
        %v1179 = vpow.pop %v1178
        %v1180 = vsel %vm381, %v1179, 0.0
        %1181 = vadd.xlane.f32.xlu0 %v1180
        %v1182 = vpop.xlane.xlu0 %1181
        %v1183 = vrcp.pop %v1182
        %v1184 = vmul.f32 %v1179, %v1183
        %1185 = vrot.lane.b32.xlu0 %v375, 40
        %v1186 = vpop.permute.xlu0 %1185
        %v1189 = vsel %vm381, %v1184, 0
        %1191 = vmatprep.subr.mxu0 0.0
        %1192 = vmatpush1.msra.mxu0 %v1186
        %1193 = vmatprep.subr.mxu0 0.0
        %1194 = vmatpush1.msra.mxu0 0.0
        %1195 = vmatprep.subr.mxu0 0.0
        %1196 = vmatpush1.msra.mxu0 0.0
        %1197 = vmatprep.subr.mxu0 0.0
        %1198 = vmatpush1.msra.mxu0 0.0
        %1199 = vmatprep.subr.mxu0 0.0
        %1200 = vmatpush1.msra.mxu0 0.0
        %1201 = vmatprep.subr.mxu0 0.0
        %1202 = vmatpush1.msra.mxu0 0.0
        %1203 = vmatprep.subr.mxu0 0.0
        %1204 = vmatpush1.msra.mxu0 0.0
        %1205 = vmatprep.subr.mxu0 0.0
        %1206 = vmatpush1.msra.mxu0 0.0
        %1207 = vmatprep.subr.mxu0 0.0
        %1208 = vmatpush1.msra.mxu0 0.0
        %1209 = vmatprep.subr.mxu0 0.0
        %1210 = vmatpush1.msra.mxu0 0.0
        %1211 = vmatprep.subr.mxu0 0.0
        %1212 = vmatpush1.msra.mxu0 0.0
        %1213 = vmatprep.subr.mxu0 0.0
        %1214 = vmatpush1.msra.mxu0 0.0
        %1215 = vmatprep.subr.mxu0 0.0
        %1216 = vmatpush1.msra.mxu0 0.0
        %1217 = vmatprep.subr.mxu0 0.0
        %1218 = vmatpush1.msra.mxu0 0.0
        %1219 = vmatprep.subr.mxu0 0.0
        %1220 = vmatpush1.msra.mxu0 0.0
        %1221 = vmatprep.subr.mxu0 0.0
        %1222 = vmatpush1.msra.mxu0 0.0
        %1223 = vmatprep.subr.mxu0 0.0
        %1224 = vmatpush1.msra.mxu0 0.0
        %1225 = vmatprep.subr.mxu0 0.0
        %1226 = vmatpush1.msra.mxu0 0.0
        %1227 = vmatprep.subr.mxu0 0.0
        %1228 = vmatpush1.msra.mxu0 0.0
        %1229 = vmatprep.subr.mxu0 0.0
        %1230 = vmatpush1.msra.mxu0 0.0
        %1231 = vmatprep.subr.mxu0 0.0
        %1232 = vmatpush1.msra.mxu0 0.0
        %1233 = vmatprep.subr.mxu0 0.0
        %1234 = vmatpush1.msra.mxu0 0.0
        %1235 = vmatprep.subr.mxu0 0.0
        %1236 = vmatpush1.msra.mxu0 0.0
        %1237 = vmatprep.subr.mxu0 0.0
        %1238 = vmatpush1.msra.mxu0 0.0
        %1239 = vmatprep.subr.mxu0 0.0
        %1240 = vmatpush1.msra.mxu0 0.0
        %1241 = vmatprep.subr.mxu0 0.0
        %1242 = vmatpush1.msra.mxu0 0.0
        %1243 = vmatprep.subr.mxu0 0.0
        %1244 = vmatpush1.msra.mxu0 0.0
        %1245 = vmatprep.subr.mxu0 0.0
        %1246 = vmatpush1.msra.mxu0 0.0
        %1247 = vmatprep.subr.mxu0 0.0
        %1248 = vmatpush1.msra.mxu0 0.0
        %1249 = vmatprep.subr.mxu0 0.0
        %1250 = vmatpush1.msra.mxu0 0.0
        %1251 = vmatprep.subr.mxu0 0.0
        %1252 = vmatpush1.msra.mxu0 0.0
        %1253 = vmatprep.subr.mxu0 0.0
        %1254 = vmatpush1.msra.mxu0 0.0
        %1255 = vmatprep.mubr.f32.mxu0 0.0
        %1256 = vmatmul.mubr.f32.gmra.mrb[0].mxu0 %v1189
        %v1257 = vpop.f32.mrb[0].mxu0
        %v1258 = vadd.f32 0.0, %v1257
        %v1259 = vpop.f32.mrb[0].mxu0
        %1260 = vdwg.mxu0
        %v1261 = vld [vmem:[#allocation7 + $0x18] sm:$0xff]
        %v1263 = vsel %vm381, %v1258, 0
        %1265 = vmatprep.subr.mxu0 0.0
        %1266 = vmatpush1.msra.mxu0 %v1261
        %1267 = vmatprep.subr.mxu0 0.0
        %1268 = vmatpush1.msra.mxu0 0.0
        %1269 = vmatprep.subr.mxu0 0.0
        %1270 = vmatpush1.msra.mxu0 0.0
        %1271 = vmatprep.subr.mxu0 0.0
        %1272 = vmatpush1.msra.mxu0 0.0
        %1273 = vmatprep.subr.mxu0 0.0
        %1274 = vmatpush1.msra.mxu0 0.0
        %1275 = vmatprep.subr.mxu0 0.0
        %1276 = vmatpush1.msra.mxu0 0.0
        %1277 = vmatprep.subr.mxu0 0.0
        %1278 = vmatpush1.msra.mxu0 0.0
        %1279 = vmatprep.subr.mxu0 0.0
        %1280 = vmatpush1.msra.mxu0 0.0
        %1281 = vmatprep.subr.mxu0 0.0
        %1282 = vmatpush1.msra.mxu0 0.0
        %1283 = vmatprep.subr.mxu0 0.0
        %1284 = vmatpush1.msra.mxu0 0.0
        %1285 = vmatprep.subr.mxu0 0.0
        %1286 = vmatpush1.msra.mxu0 0.0
        %1287 = vmatprep.subr.mxu0 0.0
        %1288 = vmatpush1.msra.mxu0 0.0
        %1289 = vmatprep.subr.mxu0 0.0
        %1290 = vmatpush1.msra.mxu0 0.0
        %1291 = vmatprep.subr.mxu0 0.0
        %1292 = vmatpush1.msra.mxu0 0.0
        %1293 = vmatprep.subr.mxu0 0.0
        %1294 = vmatpush1.msra.mxu0 0.0
        %1295 = vmatprep.subr.mxu0 0.0
        %1296 = vmatpush1.msra.mxu0 0.0
        %1297 = vmatprep.subr.mxu0 0.0
        %1298 = vmatpush1.msra.mxu0 0.0
        %1299 = vmatprep.subr.mxu0 0.0
        %1300 = vmatpush1.msra.mxu0 0.0
        %1301 = vmatprep.subr.mxu0 0.0
        %1302 = vmatpush1.msra.mxu0 0.0
        %1303 = vmatprep.subr.mxu0 0.0
        %1304 = vmatpush1.msra.mxu0 0.0
        %1305 = vmatprep.subr.mxu0 0.0
        %1306 = vmatpush1.msra.mxu0 0.0
        %1307 = vmatprep.subr.mxu0 0.0
        %1308 = vmatpush1.msra.mxu0 0.0
        %1309 = vmatprep.subr.mxu0 0.0
        %1310 = vmatpush1.msra.mxu0 0.0
        %1311 = vmatprep.subr.mxu0 0.0
        %1312 = vmatpush1.msra.mxu0 0.0
        %1313 = vmatprep.subr.mxu0 0.0
        %1314 = vmatpush1.msra.mxu0 0.0
        %1315 = vmatprep.subr.mxu0 0.0
        %1316 = vmatpush1.msra.mxu0 0.0
        %1317 = vmatprep.subr.mxu0 0.0
        %1318 = vmatpush1.msra.mxu0 0.0
        %1319 = vmatprep.subr.mxu0 0.0
        %1320 = vmatpush1.msra.mxu0 0.0
        %1321 = vmatprep.subr.mxu0 0.0
        %1322 = vmatpush1.msra.mxu0 0.0
        %1323 = vmatprep.subr.mxu0 0.0
        %1324 = vmatpush1.msra.mxu0 0.0
        %1325 = vmatprep.subr.mxu0 0.0
        %1326 = vmatpush1.msra.mxu0 0.0
        %1327 = vmatprep.subr.mxu0 0.0
        %1328 = vmatpush1.msra.mxu0 0.0
        %1329 = vmatprep.mubr.f32.mxu0 0.0
        %1330 = vmatmul.mubr.f32.gmra.mrb[0].mxu0 %v1263
        %v1331 = vpop.f32.mrb[0].mxu0
        %v1332 = vadd.f32 0.0, %v1331
        %v1333 = vpop.f32.mrb[0].mxu0
        %1334 = vdwg.mxu0
        %v1335 = vadd.f32 %v1095, %v1332
        %1336 = vst.msk [vmem:[%s268] sm:$0xff] %vm272, %v1335
        %s1337 = sand.u32 %s141, 1
        %s1338 = scalar_lea.sflag [#allocation4], %s1337
        %s1339 = sand.u32 %s141, 1
        %s1340 = smul.addr %s1339, 8
        %s1341 = scalar_lea.vmem [#allocation8], %s1340
        // Predicated region
        $region53: #{tpu_custom_call.1} parent=39 // pred_check
          %p1342 = pneg %p151
        $region54: #{tpu_custom_call.1} parent=39 // pred_check_branch
          %1344 = sbr.rel (%p1342) target = $region56
        $region55: #{tpu_custom_call.1} parent=39 // pred_region
          %s1346 = ssub.s32 128, 128
          %1347 = vsyncadd %s1338, %s1346
          %s1348 = smul.addr %s23, 128
          %s1349 = scalar_lea.hbm %s5, %s1348
          %s1351 = sshll.u32 %s1341, 4
          %s1352 = int_to_ptr.vmem [resolvable:$true] %s1351
          %1354 = dma.vmem_to_hbm [thread:$0]  %s1352, 128, %s1349, %s1338
        $region56: #{tpu_custom_call.1} parent=39 // pred_fallthru
          _
      $region40: #{tpu_custom_call.1} parent=5 // pred_fallthru
        _
      %p1355 = scmp.le.s32.totalorder 2, %s18
      // Predicated region
      $region57: #{tpu_custom_call.1} parent=5 // pred_check
        %p1356 = pneg %p1355
      $region58: #{tpu_custom_call.1} parent=5 // pred_check_branch
        %1358 = sbr.rel (%p1356) target = $region60
      $region59: #{tpu_custom_call.1} parent=5 // pred_region
        %s1359 = ssub.s32 %s18, 2
        // Predicated region
        $region61: #{tpu_custom_call.1} parent=59 // pred_check
          %p1360 = pneg %p157
        $region62: #{tpu_custom_call.1} parent=59 // pred_check_branch
          %1362 = sbr.rel (%p1360) target = $region64
        $region63: #{tpu_custom_call.1} parent=59 // pred_region
          %s1363 = sand.u32 %s142, 1
          %s1364 = scalar_lea.sflag [#allocation4], %s1363
          %s1365 = sand.u32 %s142, 1
          %s1366 = smul.addr %s1365, 8
          %s1367 = scalar_lea.vmem [#allocation8], %s1366
          %1368 = dma.done %s1364, 128
        $region64: #{tpu_custom_call.1} parent=59 // pred_fallthru
          _
      $region60: #{tpu_custom_call.1} parent=5 // pred_fallthru
        _
    $region6: #{tpu_custom_call.1} parent=1 // loop_footer
      %s22 = sadd.s32 1, %s18
    $region7: #{tpu_custom_call.1} parent=1 // loop_footer_branch
      %17 = sbr.rel target = $region3
    $region8: #{tpu_custom_call.1} parent=1 // loop_exit
      _
    %1369 = vsyncpa [#allocation3], 1
    %s1370 = scalar_lea.sflag [#allocation3], 1
    %1371 = vsyncpa %s1370, 1
    %1372 = vsyncpa [#allocation6], 1
    %1373 = vsyncpa [#allocation4], 1
    %s1374 = scalar_lea.sflag [#allocation4], 1
    %1375 = vsyncpa %s1374, 1

</llo_original>
